<compile_context>
chip_gen: v5e
topology: v5e:2x2
jax: 0.10.0
libtpu: 0.0.40
codegen_flags: <defaults>
</compile_context>

<pallas_src>
import functools
import math

import numpy as np
import jax
import jax.numpy as jnp
from jax import lax
from jax.experimental import pallas as pl
from jax.experimental.pallas import tpu as pltpu


# ----------------------------------------------------------------------------
# Fused kernel: one batch element (S, C) per grid step
# ----------------------------------------------------------------------------
def _fused_attn_kernel(x_ref, gmap_ref, gmapT_ref, gamma_ref, beta_ref,
                       wqkvT_ref, woutT_ref, bout_ref, o_ref,
                       *, n_head, groups, eps, scale):
    S, C = x_ref.shape[1], x_ref.shape[2]
    Dh = C // n_head
    cg = C // groups
    inv_n = 1.0 / float(cg * S)

    x = x_ref[0]                                             # (S, C) f32

    # ---- GroupNorm (group stats via 0/1 group-map matmuls; no reshapes) ----
    col_sum = jnp.sum(x, axis=0, keepdims=True)              # (1, C)
    col_sq = jnp.sum(x * x, axis=0, keepdims=True)           # (1, C)
    g_sum = jnp.dot(col_sum, gmapT_ref[...],
                    preferred_element_type=jnp.float32)      # (1, G)
    g_sq = jnp.dot(col_sq, gmapT_ref[...],
                   preferred_element_type=jnp.float32)       # (1, G)
    g_mean = g_sum * inv_n
    g_var = g_sq * inv_n - g_mean * g_mean
    g_rstd = lax.rsqrt(g_var + eps)
    c_mean = jnp.dot(g_mean, gmap_ref[...],
                     preferred_element_type=jnp.float32)     # (1, C)
    c_rstd = jnp.dot(g_rstd, gmap_ref[...],
                     preferred_element_type=jnp.float32)     # (1, C)
    # Fold (x - mean) * rstd * gamma + beta into a single per-channel affine:
    a_row = c_rstd * gamma_ref[...]                          # (1, C)
    b_row = beta_ref[...] - c_mean * a_row                   # (1, C)
    xn = x * a_row + b_row                                   # (S, C), 2 VPU passes

    # ---- 1x1 qkv conv == (S, C) @ (C, 3C); bf16 operands, f32 accumulation ----
    qkv = jnp.dot(xn.astype(jnp.bfloat16), wqkvT_ref[...],
                  preferred_element_type=jnp.float32)        # (S, 3C) f32

    # ---- per-head attention, output projection accumulated per head ----
    y = jnp.zeros((S, C), jnp.float32)
    for h in range(n_head):
        base = h * 3 * Dh
        # scale folded into q (cheaper: (S, Dh) instead of (S, S))
        q = (qkv[:, base:base + Dh] * scale).astype(jnp.bfloat16)       # (S, Dh)
        k = qkv[:, base + Dh:base + 2 * Dh].astype(jnp.bfloat16)        # (S, Dh)
        v = qkv[:, base + 2 * Dh:base + 3 * Dh].astype(jnp.bfloat16)    # (S, Dh)

        # scores[s, t] = sum_d q[s, d] * k[t, d]   ('qd,kd->qk')
        s = lax.dot_general(q, k, (((1,), (1,)), ((), ())),
                            preferred_element_type=jnp.float32)         # (S, S) f32
        m = jnp.max(s, axis=-1, keepdims=True)
        p = jnp.exp(s - m)                                              # EUP
        inv_den = pl.reciprocal(jnp.sum(p, axis=-1, keepdims=True),
                                approx=True)                            # EUP
        p = p * inv_den                                                 # f32 softmax

        out_h = jnp.dot(p.astype(jnp.bfloat16), v,
                        preferred_element_type=jnp.float32)             # (S, Dh)
        # accumulate this head's slice of the 1x1 output projection
        y = y + jnp.dot(out_h.astype(jnp.bfloat16),
                        woutT_ref[h * Dh:(h + 1) * Dh, :],
                        preferred_element_type=jnp.float32)             # (S, C)

    o_ref[0] = y + bout_ref[...] + x                          # bias + residual


# ----------------------------------------------------------------------------
# Wrapper
# ----------------------------------------------------------------------------
@functools.lru_cache(maxsize=None)
def _group_map(C, G):
    ch = np.arange(C)
    return (ch[None, :] // (C // G) == np.arange(G)[:, None]).astype(np.float32)  # (G, C)


def self_attention_forward(x, gn_w, gn_b, w_qkv, w_out, b_out, *,
                           n_head=1, norm_groups=32, eps=1e-5):
    B, C, H, W = x.shape
    S = H * W
    assert C % norm_groups == 0 and C % n_head == 0

    gmap_np = _group_map(C, norm_groups)
    gmap = jnp.asarray(gmap_np)            # (G, C)
    gmapT = jnp.asarray(gmap_np.T)         # (C, G)

    # layout glue: NCHW -> (B, S, C)  (tokens on sublanes, channels on lanes)
    x_t = x.astype(jnp.float32).reshape(B, C, S).transpose(0, 2, 1)

    gamma = gn_w.reshape(1, C).astype(jnp.float32)
    beta = gn_b.reshape(1, C).astype(jnp.float32)
    wqkvT = jnp.transpose(w_qkv.reshape(3 * C, C)).astype(jnp.bfloat16)   # (C, 3C)
    woutT = jnp.transpose(w_out.reshape(C, C)).astype(jnp.bfloat16)       # (C, C)
    bout = b_out.reshape(1, C).astype(jnp.float32)

    kernel = functools.partial(_fused_attn_kernel, n_head=n_head,
                               groups=norm_groups, eps=eps,
                               scale=1.0 / math.sqrt(C))

    y = pl.pallas_call(
        kernel,
        out_shape=jax.ShapeDtypeStruct((B, S, C), jnp.float32),
        grid=(B,),
        in_specs=[
            pl.BlockSpec((1, S, C), lambda b: (b, 0, 0)),       # x
            pl.BlockSpec((norm_groups, C), lambda b: (0, 0)),   # gmap
            pl.BlockSpec((C, norm_groups), lambda b: (0, 0)),   # gmapT
            pl.BlockSpec((1, C), lambda b: (0, 0)),             # GroupNorm gamma
            pl.BlockSpec((1, C), lambda b: (0, 0)),             # GroupNorm beta
            pl.BlockSpec((C, 3 * C), lambda b: (0, 0)),         # qkv weight^T (bf16)
            pl.BlockSpec((C, C), lambda b: (0, 0)),             # out weight^T (bf16)
            pl.BlockSpec((1, C), lambda b: (0, 0)),             # out bias
        ],
        out_specs=pl.BlockSpec((1, S, C), lambda b: (b, 0, 0)),
        compiler_params=pltpu.CompilerParams(
            dimension_semantics=("parallel",)),
    )(x_t, gmap, gmapT, gamma, beta, wqkvT, woutT, bout)

    return y.transpose(0, 2, 1).reshape(B, C, H, W)


# ----------------------------------------------------------------------------
# Pure-JAX reference (mirrors the PyTorch module) for validation
# ----------------------------------------------------------------------------
def ref_forward(x, gn_w, gn_b, w_qkv, w_out, b_out, *, n_head, norm_groups, eps=1e-5):
    B, C, H, W = x.shape
    G = norm_groups
    Dh = C // n_head
    xg = x.reshape(B, G, C // G, H, W)
    mean = xg.mean(axis=(2, 3, 4), keepdims=True)
    var = ((xg - mean) ** 2).mean(axis=(2, 3, 4), keepdims=True)
    xn = ((xg - mean) / jnp.sqrt(var + eps)).reshape(B, C, H, W)
    xn = xn * gn_w.reshape(1, C, 1, 1) + gn_b.reshape(1, C, 1, 1)

    qkv = jnp.einsum('oc,bchw->bohw', w_qkv.reshape(3 * C, C), xn)
    qkv = qkv.reshape(B, n_head, 3 * Dh, H, W)
    q, k, v = qkv[:, :, :Dh], qkv[:, :, Dh:2 * Dh], qkv[:, :, 2 * Dh:]

    attn = jnp.einsum('bnchw,bncyx->bnhwyx', q, k) / math.sqrt(C)
    attn = attn.reshape(B, n_head, H, W, H * W)
    attn = jax.nn.softmax(attn, axis=-1)
    attn = attn.reshape(B, n_head, H, W, H, W)

    out = jnp.einsum('bnhwyx,bncyx->bnchw', attn, v).reshape(B, C, H, W)
    out = jnp.einsum('oc,bchw->bohw', w_out.reshape(C, C), out) + b_out.reshape(1, C, 1, 1)
    return out + x


if __name__ == "__main__":
    key = jax.random.PRNGKey(0)
    kx, kg, kb, kq, kw, kb2 = jax.random.split(key, 6)

    # in_channel = 8*D with D=16; C=128 keeps the output slab lane-dense (128 lanes).
    B, C, H, W = 2, 128, 8, 8
    n_head, groups = 2, 32

    x = jax.random.normal(kx, (B, C, H, W), dtype=jnp.float32)
    gn_w = 1.0 + 0.2 * jax.random.normal(kg, (C,), dtype=jnp.float32)
    gn_b = 0.2 * jax.random.normal(kb, (C,), dtype=jnp.float32)

    bound = 1.0 / math.sqrt(C)      # PyTorch-style uniform init for 1x1 convs
    w_qkv = jax.random.uniform(kq, (3 * C, C, 1, 1), minval=-bound, maxval=bound,
                               dtype=jnp.float32)
    w_out = jax.random.uniform(kw, (C, C, 1, 1), minval=-bound, maxval=bound,
                               dtype=jnp.float32)
    b_out = jax.random.uniform(kb2, (C,), minval=-bound, maxval=bound,
                               dtype=jnp.float32)

    fwd = jax.jit(functools.partial(self_attention_forward,
                                    n_head=n_head, norm_groups=groups))
    y = jax.block_until_ready(fwd(x, gn_w, gn_b, w_qkv, w_out, b_out))
    assert y.shape == (B, C, H, W), y.shape

    y_ref = jax.block_until_ready(
        ref_forward(x, gn_w, gn_b, w_qkv, w_out, b_out,
                    n_head=n_head, norm_groups=groups))
    if not jnp.allclose(y, y_ref, atol=3e-2, rtol=3e-2):
        err = float(jnp.max(jnp.abs(y - y_ref)))
        raise AssertionError(f"Pallas result mismatch vs JAX reference (max abs err {err})")

    print("KERNEL_OK")
</pallas_src>

<mosaic_0001>
module attributes {stable_mosaic.version = 11 : i64} {
  func.func @_fused_attn_kernel(%arg0: i32, %arg1: memref<1x64x128xf32, #tpu.memory_space<vmem>>, %arg2: memref<32x128xf32, #tpu.memory_space<vmem>>, %arg3: memref<128x32xf32, #tpu.memory_space<vmem>>, %arg4: memref<1x128xf32, #tpu.memory_space<vmem>>, %arg5: memref<1x128xf32, #tpu.memory_space<vmem>>, %arg6: memref<128x384xbf16, #tpu.memory_space<vmem>>, %arg7: memref<128x128xbf16, #tpu.memory_space<vmem>>, %arg8: memref<1x128xf32, #tpu.memory_space<vmem>>, %arg9: memref<1x64x128xf32, #tpu.memory_space<vmem>>) attributes {dimension_semantics = [#tpu.dimension_semantics<parallel>], iteration_bounds = array<i64: 2>, scalar_prefetch = 0 : i64, scratch_operands = 0 : i64, tpu.core_type = #tpu.core_type<tc>, window_params = [{transform_indices = @transform_0, window_bounds = array<i64: 1, 64, 128>}, {pipeline_mode = #tpu.pipeline_mode<synchronous>, transform_indices = @transform_1, window_bounds = array<i64: 32, 128>}, {pipeline_mode = #tpu.pipeline_mode<synchronous>, transform_indices = @transform_2, window_bounds = array<i64: 128, 32>}, {pipeline_mode = #tpu.pipeline_mode<synchronous>, transform_indices = @transform_3, window_bounds = array<i64: 1, 128>}, {pipeline_mode = #tpu.pipeline_mode<synchronous>, transform_indices = @transform_4, window_bounds = array<i64: 1, 128>}, {pipeline_mode = #tpu.pipeline_mode<synchronous>, transform_indices = @transform_5, window_bounds = array<i64: 128, 384>}, {pipeline_mode = #tpu.pipeline_mode<synchronous>, transform_indices = @transform_6, window_bounds = array<i64: 128, 128>}, {pipeline_mode = #tpu.pipeline_mode<synchronous>, transform_indices = @transform_7, window_bounds = array<i64: 1, 128>}, {transform_indices = @transform_8, window_bounds = array<i64: 1, 64, 128>}]} {
    %c0 = arith.constant 0 : index
    %c0_0 = arith.constant 0 : index
    %c0_1 = arith.constant 0 : index
    %0 = vector.load %arg1[%c0, %c0_0, %c0_1] : memref<1x64x128xf32, #tpu.memory_space<vmem>>, vector<1x64x128xf32>
    %1 = vector.shape_cast %0 : vector<1x64x128xf32> to vector<64x128xf32>
    %cst = arith.constant dense<0.000000e+00> : vector<128xf32>
    %2 = vector.multi_reduction <add>, %1, %cst [0] : vector<64x128xf32> to vector<128xf32>
    %3 = vector.shape_cast %2 : vector<128xf32> to vector<1x128xf32>
    %4 = arith.mulf %1, %1 : vector<64x128xf32>
    %cst_2 = arith.constant dense<0.000000e+00> : vector<128xf32>
    %5 = vector.multi_reduction <add>, %4, %cst_2 [0] : vector<64x128xf32> to vector<128xf32>
    %6 = vector.shape_cast %5 : vector<128xf32> to vector<1x128xf32>
    %c0_3 = arith.constant 0 : index
    %c0_4 = arith.constant 0 : index
    %7 = vector.load %arg3[%c0_3, %c0_4] : memref<128x32xf32, #tpu.memory_space<vmem>>, vector<128x32xf32>
    %cst_5 = arith.constant dense<0.000000e+00> : vector<1x32xf32>
    %8 = tpu.matmul %3, %7, %cst_5 {dimension_numbers = #tpu.dot_dimension_numbers<[1], [0], [0], [1], [0, 0, 1, 1], [], []>} : vector<1x128xf32>, vector<128x32xf32>, vector<1x32xf32> -> vector<1x32xf32>
    %c0_6 = arith.constant 0 : index
    %c0_7 = arith.constant 0 : index
    %9 = vector.load %arg3[%c0_6, %c0_7] : memref<128x32xf32, #tpu.memory_space<vmem>>, vector<128x32xf32>
    %cst_8 = arith.constant dense<0.000000e+00> : vector<1x32xf32>
    %10 = tpu.matmul %6, %9, %cst_8 {dimension_numbers = #tpu.dot_dimension_numbers<[1], [0], [0], [1], [0, 0, 1, 1], [], []>} : vector<1x128xf32>, vector<128x32xf32>, vector<1x32xf32> -> vector<1x32xf32>
    %cst_9 = arith.constant 3.906250e-03 : f32
    %11 = vector.broadcast %cst_9 : f32 to vector<1x32xf32>
    %12 = arith.mulf %8, %11 : vector<1x32xf32>
    %cst_10 = arith.constant 3.906250e-03 : f32
    %13 = vector.broadcast %cst_10 : f32 to vector<1x32xf32>
    %14 = arith.mulf %10, %13 : vector<1x32xf32>
    %15 = arith.mulf %12, %12 : vector<1x32xf32>
    %16 = arith.subf %14, %15 : vector<1x32xf32>
    %cst_11 = arith.constant 9.99999974E-6 : f32
    %17 = vector.broadcast %cst_11 : f32 to vector<1x32xf32>
    %18 = arith.addf %16, %17 : vector<1x32xf32>
    %19 = math.rsqrt %18 : vector<1x32xf32>
    %c0_12 = arith.constant 0 : index
    %c0_13 = arith.constant 0 : index
    %20 = vector.load %arg2[%c0_12, %c0_13] : memref<32x128xf32, #tpu.memory_space<vmem>>, vector<32x128xf32>
    %cst_14 = arith.constant dense<0.000000e+00> : vector<1x128xf32>
    %21 = tpu.matmul %12, %20, %cst_14 {dimension_numbers = #tpu.dot_dimension_numbers<[1], [0], [0], [1], [0, 0, 1, 1], [], []>} : vector<1x32xf32>, vector<32x128xf32>, vector<1x128xf32> -> vector<1x128xf32>
    %c0_15 = arith.constant 0 : index
    %c0_16 = arith.constant 0 : index
    %22 = vector.load %arg2[%c0_15, %c0_16] : memref<32x128xf32, #tpu.memory_space<vmem>>, vector<32x128xf32>
    %cst_17 = arith.constant dense<0.000000e+00> : vector<1x128xf32>
    %23 = tpu.matmul %19, %22, %cst_17 {dimension_numbers = #tpu.dot_dimension_numbers<[1], [0], [0], [1], [0, 0, 1, 1], [], []>} : vector<1x32xf32>, vector<32x128xf32>, vector<1x128xf32> -> vector<1x128xf32>
    %c0_18 = arith.constant 0 : index
    %c0_19 = arith.constant 0 : index
    %24 = vector.load %arg4[%c0_18, %c0_19] : memref<1x128xf32, #tpu.memory_space<vmem>>, vector<1x128xf32>
    %25 = arith.mulf %23, %24 : vector<1x128xf32>
    %c0_20 = arith.constant 0 : index
    %c0_21 = arith.constant 0 : index
    %26 = vector.load %arg5[%c0_20, %c0_21] : memref<1x128xf32, #tpu.memory_space<vmem>>, vector<1x128xf32>
    %27 = arith.mulf %21, %25 : vector<1x128xf32>
    %28 = arith.subf %26, %27 : vector<1x128xf32>
    %29 = vector.broadcast %25 : vector<1x128xf32> to vector<64x128xf32>
    %30 = arith.mulf %1, %29 : vector<64x128xf32>
    %31 = vector.broadcast %28 : vector<1x128xf32> to vector<64x128xf32>
    %32 = arith.addf %30, %31 : vector<64x128xf32>
    %33 = arith.truncf %32 : vector<64x128xf32> to vector<64x128xbf16>
    %c0_22 = arith.constant 0 : index
    %c0_23 = arith.constant 0 : index
    %34 = vector.load %arg6[%c0_22, %c0_23] : memref<128x384xbf16, #tpu.memory_space<vmem>>, vector<128x384xbf16>
    %cst_24 = arith.constant dense<0.000000e+00> : vector<64x384xf32>
    %35 = tpu.matmul %33, %34, %cst_24 {dimension_numbers = #tpu.dot_dimension_numbers<[1], [0], [0], [1], [0, 0, 1, 1], [], []>} : vector<64x128xbf16>, vector<128x384xbf16>, vector<64x384xf32> -> vector<64x384xf32>
    %cst_25 = arith.constant 0.000000e+00 : f32
    %36 = vector.broadcast %cst_25 : f32 to vector<64x128xf32>
    %37 = vector.extract_strided_slice %35 {offsets = [0, 0], sizes = [64, 64], strides = [1, 1]} : vector<64x384xf32> to vector<64x64xf32>
    %cst_26 = arith.constant 0.0883883461 : f32
    %38 = vector.broadcast %cst_26 : f32 to vector<64x64xf32>
    %39 = arith.mulf %37, %38 : vector<64x64xf32>
    %40 = arith.truncf %39 : vector<64x64xf32> to vector<64x64xbf16>
    %41 = vector.extract_strided_slice %35 {offsets = [0, 64], sizes = [64, 64], strides = [1, 1]} : vector<64x384xf32> to vector<64x64xf32>
    %42 = arith.truncf %41 : vector<64x64xf32> to vector<64x64xbf16>
    %43 = vector.extract_strided_slice %35 {offsets = [0, 128], sizes = [64, 64], strides = [1, 1]} : vector<64x384xf32> to vector<64x64xf32>
    %44 = arith.truncf %43 : vector<64x64xf32> to vector<64x64xbf16>
    %cst_27 = arith.constant dense<0.000000e+00> : vector<64x64xf32>
    %45 = tpu.matmul %40, %42, %cst_27 {dimension_numbers = #tpu.dot_dimension_numbers<[1], [1], [0], [0], [0, 0, 1, 0], [], []>} : vector<64x64xbf16>, vector<64x64xbf16>, vector<64x64xf32> -> vector<64x64xf32>
    %cst_28 = arith.constant dense<0xFF800000> : vector<64xf32>
    %46 = vector.multi_reduction <maximumf>, %45, %cst_28 [1] : vector<64x64xf32> to vector<64xf32>
    %47 = vector.shape_cast %46 : vector<64xf32> to vector<64x1xf32>
    %48 = vector.broadcast %47 : vector<64x1xf32> to vector<64x64xf32>
    %49 = arith.subf %45, %48 : vector<64x64xf32>
    %50 = math.exp %49 : vector<64x64xf32>
    %cst_29 = arith.constant dense<0.000000e+00> : vector<64xf32>
    %51 = vector.multi_reduction <add>, %50, %cst_29 [1] : vector<64x64xf32> to vector<64xf32>
    %52 = vector.shape_cast %51 : vector<64xf32> to vector<64x1xf32>
    %53 = tpu.reciprocal %52 {approx = true} : vector<64x1xf32> -> vector<64x1xf32>
    %54 = vector.broadcast %53 : vector<64x1xf32> to vector<64x64xf32>
    %55 = arith.mulf %50, %54 : vector<64x64xf32>
    %56 = arith.truncf %55 : vector<64x64xf32> to vector<64x64xbf16>
    %cst_30 = arith.constant dense<0.000000e+00> : vector<64x64xf32>
    %57 = tpu.matmul %56, %44, %cst_30 {dimension_numbers = #tpu.dot_dimension_numbers<[1], [0], [0], [1], [0, 0, 1, 1], [], []>} : vector<64x64xbf16>, vector<64x64xbf16>, vector<64x64xf32> -> vector<64x64xf32>
    %58 = arith.truncf %57 : vector<64x64xf32> to vector<64x64xbf16>
    %c0_31 = arith.constant 0 : index
    %c0_32 = arith.constant 0 : index
    %59 = vector.load %arg7[%c0_31, %c0_32] : memref<128x128xbf16, #tpu.memory_space<vmem>>, vector<64x128xbf16>
    %cst_33 = arith.constant dense<0.000000e+00> : vector<64x128xf32>
    %60 = tpu.matmul %58, %59, %cst_33 {dimension_numbers = #tpu.dot_dimension_numbers<[1], [0], [0], [1], [0, 0, 1, 1], [], []>} : vector<64x64xbf16>, vector<64x128xbf16>, vector<64x128xf32> -> vector<64x128xf32>
    %61 = arith.addf %36, %60 : vector<64x128xf32>
    %62 = vector.extract_strided_slice %35 {offsets = [0, 192], sizes = [64, 64], strides = [1, 1]} : vector<64x384xf32> to vector<64x64xf32>
    %cst_34 = arith.constant 0.0883883461 : f32
    %63 = vector.broadcast %cst_34 : f32 to vector<64x64xf32>
    %64 = arith.mulf %62, %63 : vector<64x64xf32>
    %65 = arith.truncf %64 : vector<64x64xf32> to vector<64x64xbf16>
    %66 = vector.extract_strided_slice %35 {offsets = [0, 256], sizes = [64, 64], strides = [1, 1]} : vector<64x384xf32> to vector<64x64xf32>
    %67 = arith.truncf %66 : vector<64x64xf32> to vector<64x64xbf16>
    %68 = vector.extract_strided_slice %35 {offsets = [0, 320], sizes = [64, 64], strides = [1, 1]} : vector<64x384xf32> to vector<64x64xf32>
    %69 = arith.truncf %68 : vector<64x64xf32> to vector<64x64xbf16>
    %cst_35 = arith.constant dense<0.000000e+00> : vector<64x64xf32>
    %70 = tpu.matmul %65, %67, %cst_35 {dimension_numbers = #tpu.dot_dimension_numbers<[1], [1], [0], [0], [0, 0, 1, 0], [], []>} : vector<64x64xbf16>, vector<64x64xbf16>, vector<64x64xf32> -> vector<64x64xf32>
    %cst_36 = arith.constant dense<0xFF800000> : vector<64xf32>
    %71 = vector.multi_reduction <maximumf>, %70, %cst_36 [1] : vector<64x64xf32> to vector<64xf32>
    %72 = vector.shape_cast %71 : vector<64xf32> to vector<64x1xf32>
    %73 = vector.broadcast %72 : vector<64x1xf32> to vector<64x64xf32>
    %74 = arith.subf %70, %73 : vector<64x64xf32>
    %75 = math.exp %74 : vector<64x64xf32>
    %cst_37 = arith.constant dense<0.000000e+00> : vector<64xf32>
    %76 = vector.multi_reduction <add>, %75, %cst_37 [1] : vector<64x64xf32> to vector<64xf32>
    %77 = vector.shape_cast %76 : vector<64xf32> to vector<64x1xf32>
    %78 = tpu.reciprocal %77 {approx = true} : vector<64x1xf32> -> vector<64x1xf32>
    %79 = vector.broadcast %78 : vector<64x1xf32> to vector<64x64xf32>
    %80 = arith.mulf %75, %79 : vector<64x64xf32>
    %81 = arith.truncf %80 : vector<64x64xf32> to vector<64x64xbf16>
    %cst_38 = arith.constant dense<0.000000e+00> : vector<64x64xf32>
    %82 = tpu.matmul %81, %69, %cst_38 {dimension_numbers = #tpu.dot_dimension_numbers<[1], [0], [0], [1], [0, 0, 1, 1], [], []>} : vector<64x64xbf16>, vector<64x64xbf16>, vector<64x64xf32> -> vector<64x64xf32>
    %83 = arith.truncf %82 : vector<64x64xf32> to vector<64x64xbf16>
    %c64 = arith.constant 64 : index
    %c0_39 = arith.constant 0 : index
    %84 = vector.load %arg7[%c64, %c0_39] : memref<128x128xbf16, #tpu.memory_space<vmem>>, vector<64x128xbf16>
    %cst_40 = arith.constant dense<0.000000e+00> : vector<64x128xf32>
    %85 = tpu.matmul %83, %84, %cst_40 {dimension_numbers = #tpu.dot_dimension_numbers<[1], [0], [0], [1], [0, 0, 1, 1], [], []>} : vector<64x64xbf16>, vector<64x128xbf16>, vector<64x128xf32> -> vector<64x128xf32>
    %86 = arith.addf %61, %85 : vector<64x128xf32>
    %c0_41 = arith.constant 0 : index
    %c0_42 = arith.constant 0 : index
    %87 = vector.load %arg8[%c0_41, %c0_42] : memref<1x128xf32, #tpu.memory_space<vmem>>, vector<1x128xf32>
    %88 = vector.broadcast %87 : vector<1x128xf32> to vector<64x128xf32>
    %89 = arith.addf %86, %88 : vector<64x128xf32>
    %90 = arith.addf %89, %1 : vector<64x128xf32>
    %c0_43 = arith.constant 0 : index
    %c0_44 = arith.constant 0 : index
    %c0_45 = arith.constant 0 : index
    %91 = vector.load %arg9[%c0_43, %c0_44, %c0_45] : memref<1x64x128xf32, #tpu.memory_space<vmem>>, vector<1x64x128xf32>
    %92 = vector.shape_cast %91 : vector<1x64x128xf32> to vector<64x128xf32>
    %93 = vector.shape_cast %90 : vector<64x128xf32> to vector<1x64x128xf32>
    tpu.vector_store %arg9[%c0_43, %c0_44, %c0_45], %93 {strides = array<i32>} : memref<1x64x128xf32, #tpu.memory_space<vmem>>, vector<1x64x128xf32>,
    return
  }
  func.func @transform_0(%arg0: i32) -> (i32, i32, i32) {
    %c0_i32 = arith.constant 0 : i32
    %c0_i32_0 = arith.constant 0 : i32
    %c0_i32_1 = arith.constant 0 : i32
    return %arg0, %c0_i32, %c0_i32_0 : i32, i32, i32
  }
  func.func @transform_1(%arg0: i32) -> (i32, i32) {
    %c0_i32 = arith.constant 0 : i32
    %c0_i32_0 = arith.constant 0 : i32
    %c0_i32_1 = arith.constant 0 : i32
    return %c0_i32, %c0_i32_0 : i32, i32
  }
  func.func @transform_2(%arg0: i32) -> (i32, i32) {
    %c0_i32 = arith.constant 0 : i32
    %c0_i32_0 = arith.constant 0 : i32
    %c0_i32_1 = arith.constant 0 : i32
    return %c0_i32, %c0_i32_0 : i32, i32
  }
  func.func @transform_3(%arg0: i32) -> (i32, i32) {
    %c0_i32 = arith.constant 0 : i32
    %c0_i32_0 = arith.constant 0 : i32
    %c0_i32_1 = arith.constant 0 : i32
    return %c0_i32, %c0_i32_0 : i32, i32
  }
  func.func @transform_4(%arg0: i32) -> (i32, i32) {
    %c0_i32 = arith.constant 0 : i32
    %c0_i32_0 = arith.constant 0 : i32
    %c0_i32_1 = arith.constant 0 : i32
    return %c0_i32, %c0_i32_0 : i32, i32
  }
  func.func @transform_5(%arg0: i32) -> (i32, i32) {
    %c0_i32 = arith.constant 0 : i32
    %c0_i32_0 = arith.constant 0 : i32
    %c0_i32_1 = arith.constant 0 : i32
    return %c0_i32, %c0_i32_0 : i32, i32
  }
  func.func @transform_6(%arg0: i32) -> (i32, i32) {
    %c0_i32 = arith.constant 0 : i32
    %c0_i32_0 = arith.constant 0 : i32
    %c0_i32_1 = arith.constant 0 : i32
    return %c0_i32, %c0_i32_0 : i32, i32
  }
  func.func @transform_7(%arg0: i32) -> (i32, i32) {
    %c0_i32 = arith.constant 0 : i32
    %c0_i32_0 = arith.constant 0 : i32
    %c0_i32_1 = arith.constant 0 : i32
    return %c0_i32, %c0_i32_0 : i32, i32
  }
  func.func @transform_8(%arg0: i32) -> (i32, i32, i32) {
    %c0_i32 = arith.constant 0 : i32
    %c0_i32_0 = arith.constant 0 : i32
    %c0_i32_1 = arith.constant 0 : i32
    return %arg0, %c0_i32, %c0_i32_0 : i32, i32, i32
  }
}

</mosaic_0001>

<llo_original>
// kernel: self_attention_forward.1
$region0: #{self_attention_forward.1}
  #allocation0 [shape = 'u32[]', space=smem, size = 0x4, offset = 0x4, fixed_abs, tag = 'smem constant byte address 0x4 - core index']
  #allocation1 [shape = 'u32[72,128]{1,0:T(1,128)}', space=vmem, size = 0x9000, scoped, tag = 'internal scratch']
  %s0 = inlined_call_operand.vmem [shape: f32[2,64,128], index: 0, kind: input, shape index: {}]
  %s1 = inlined_call_operand.vmem [shape: f32[32,128], index: 1, kind: input, shape index: {}]
  %s2 = inlined_call_operand.vmem [shape: f32[128,32], index: 2, kind: input, shape index: {}]
  %s3 = inlined_call_operand.vmem [shape: f32[1,128], index: 3, kind: input, shape index: {}]
  %s4 = inlined_call_operand.vmem [shape: f32[1,128], index: 4, kind: input, shape index: {}]
  %s5 = inlined_call_operand.vmem [shape: bf16[128,384], index: 5, kind: input, shape index: {}]
  %s6 = inlined_call_operand.vmem [shape: bf16[128,128], index: 6, kind: input, shape index: {}]
  %s7 = inlined_call_operand.vmem [shape: f32[1,128], index: 7, kind: input, shape index: {}]
  %s8 = inlined_call_operand.hbm [shape: f32[2,64,128], index: 8, kind: output, shape index: {}]
  %s9 = sld [smem:[#allocation0]]
  $region65: #{self_attention_forward.1} parent=0
    _
  %s11 = ssub.s32 1, %s9
  %s12 = scalar_select 0, %s11, %s9
  $region1: #{self_attention_forward.1} parent=0
    #allocation2 [shape = 'u8[65536]{0}', space=vmem, size = 0x10000, scoped, tag = 'output window, operand 0']
    #allocation3 [shape = 's32[2]{0}', space=sflag, size = 0x8, scoped, tag = 'scoped memory for self_attention_forward.1']
    %13 = vsyncpa [#allocation3], 0
    %s14 = scalar_lea.sflag [#allocation3], 1
    %15 = vsyncpa %s14, 0
    loop: start=0, step=1, limit=4
    $region2: #{self_attention_forward.1} parent=1 // loop_pre_header
      _
    $region3: #{self_attention_forward.1} parent=1 // loop_header
      %s17 = sphi 0, %s21
      %p18 = scmp.ge.s32.totalorder %s17, 4
      %s27 = sphi 0, %s29
      %s30 = sphi 0, %s27
      %s31 = sphi 0, %s30
      %s47 = sphi 0, %s31
      %s51 = sphi 0, %s51
      %s53 = sphi 0, %s51
      %s54 = sphi 0, %s53
      %s68 = sphi 0, %s54
      %s72 = sphi 0, %s72
      %s74 = sphi 0, %s72
      %s75 = sphi 0, %s74
      %s89 = sphi 0, %s75
      %s93 = sphi 0, %s93
      %s95 = sphi 0, %s93
      %s96 = sphi 0, %s95
      %s110 = sphi 0, %s96
      %s114 = sphi 0, %s114
      %s116 = sphi 0, %s114
      %s117 = sphi 0, %s116
      %s131 = sphi 0, %s117
      %s135 = sphi 0, %s135
      %s137 = sphi 0, %s135
      %s138 = sphi 0, %s137
      %s152 = sphi 0, %s138
      %s156 = sphi 0, %s156
      %s158 = sphi 0, %s156
      %s159 = sphi 0, %s158
      %s173 = sphi 0, %s159
      %s177 = sphi 0, %s177
      %s179 = sphi 0, %s177
      %s180 = sphi 0, %s179
      %s194 = sphi 0, %s180
      %s200 = sphi 0, %s202
      %s203 = sphi 0, %s200
      %s204 = sphi 0, %s203
      %s220 = sphi 0, %s204
    $region4: #{self_attention_forward.1} parent=1 // loop_header_branch
      %20 = sbr.rel (%p18) target = $region8
    $region5: #{self_attention_forward.1} parent=1 // loop_body
      %s22 = ssub.s32 %s17, 1
      %s23 = ssub.s32 %s17, 2
      %s24 = sadd.s32 %s17, 1
      %s25 = ssub.s32 %s17, %s24
      %p26 = scmp.eq.s32.totalorder %s25, 0
      %s28 = sadd.s32 %s27, 1
      %s29 = scalar_select %p26, %s27, %s28
      %p32 = pneg %p26
      %p33 = scmp.eq.s32.totalorder %s17, 1
      %p34 = por %p32, %p33
      %p35 = scmp.ne.s32.totalorder %s27, %s30
      %p36 = scmp.eq.s32.totalorder %s17, 0
      %p37 = por %p35, %p36
      %p38 = scmp.ne.s32.totalorder %s27, %s30
      %p39 = scmp.eq.s32.totalorder %s22, 1
      %p40 = por %p38, %p39
      %p41 = scmp.ne.s32.totalorder %s30, %s31
      %p42 = scmp.eq.s32.totalorder %s22, 0
      %p43 = por %p41, %p42
      %p44 = scmp.ne.s32.totalorder %s30, %s31
      %p45 = scmp.eq.s32.totalorder %s23, 1
      %p46 = por %p44, %p45
      %p48 = scmp.ne.s32.totalorder %s31, %s47
      %p49 = scmp.eq.s32.totalorder %s23, 0
      %p50 = por %p48, %p49
      %s52 = sadd.s32 %s51, 1
      %p55 = scmp.eq.s32.totalorder %s17, 1
      %p56 = scmp.ne.s32.totalorder %s51, %s53
      %p57 = scmp.eq.s32.totalorder %s17, 0
      %p58 = por %p56, %p57
      %p59 = scmp.ne.s32.totalorder %s51, %s53
      %p60 = scmp.eq.s32.totalorder %s22, 1
      %p61 = por %p59, %p60
      %p62 = scmp.ne.s32.totalorder %s53, %s54
      %p63 = scmp.eq.s32.totalorder %s22, 0
      %p64 = por %p62, %p63
      %p65 = scmp.ne.s32.totalorder %s53, %s54
      %p66 = scmp.eq.s32.totalorder %s23, 1
      %p67 = por %p65, %p66
      %p69 = scmp.ne.s32.totalorder %s54, %s68
      %p70 = scmp.eq.s32.totalorder %s23, 0
      %p71 = por %p69, %p70
      %s73 = sadd.s32 %s72, 1
      %p76 = scmp.eq.s32.totalorder %s17, 1
      %p77 = scmp.ne.s32.totalorder %s72, %s74
      %p78 = scmp.eq.s32.totalorder %s17, 0
      %p79 = por %p77, %p78
      %p80 = scmp.ne.s32.totalorder %s72, %s74
      %p81 = scmp.eq.s32.totalorder %s22, 1
      %p82 = por %p80, %p81
      %p83 = scmp.ne.s32.totalorder %s74, %s75
      %p84 = scmp.eq.s32.totalorder %s22, 0
      %p85 = por %p83, %p84
      %p86 = scmp.ne.s32.totalorder %s74, %s75
      %p87 = scmp.eq.s32.totalorder %s23, 1
      %p88 = por %p86, %p87
      %p90 = scmp.ne.s32.totalorder %s75, %s89
      %p91 = scmp.eq.s32.totalorder %s23, 0
      %p92 = por %p90, %p91
      %s94 = sadd.s32 %s93, 1
      %p97 = scmp.eq.s32.totalorder %s17, 1
      %p98 = scmp.ne.s32.totalorder %s93, %s95
      %p99 = scmp.eq.s32.totalorder %s17, 0
      %p100 = por %p98, %p99
      %p101 = scmp.ne.s32.totalorder %s93, %s95
      %p102 = scmp.eq.s32.totalorder %s22, 1
      %p103 = por %p101, %p102
      %p104 = scmp.ne.s32.totalorder %s95, %s96
      %p105 = scmp.eq.s32.totalorder %s22, 0
      %p106 = por %p104, %p105
      %p107 = scmp.ne.s32.totalorder %s95, %s96
      %p108 = scmp.eq.s32.totalorder %s23, 1
      %p109 = por %p107, %p108
      %p111 = scmp.ne.s32.totalorder %s96, %s110
      %p112 = scmp.eq.s32.totalorder %s23, 0
      %p113 = por %p111, %p112
      %s115 = sadd.s32 %s114, 1
      %p118 = scmp.eq.s32.totalorder %s17, 1
      %p119 = scmp.ne.s32.totalorder %s114, %s116
      %p120 = scmp.eq.s32.totalorder %s17, 0
      %p121 = por %p119, %p120
      %p122 = scmp.ne.s32.totalorder %s114, %s116
      %p123 = scmp.eq.s32.totalorder %s22, 1
      %p124 = por %p122, %p123
      %p125 = scmp.ne.s32.totalorder %s116, %s117
      %p126 = scmp.eq.s32.totalorder %s22, 0
      %p127 = por %p125, %p126
      %p128 = scmp.ne.s32.totalorder %s116, %s117
      %p129 = scmp.eq.s32.totalorder %s23, 1
      %p130 = por %p128, %p129
      %p132 = scmp.ne.s32.totalorder %s117, %s131
      %p133 = scmp.eq.s32.totalorder %s23, 0
      %p134 = por %p132, %p133
      %s136 = sadd.s32 %s135, 1
      %p139 = scmp.eq.s32.totalorder %s17, 1
      %p140 = scmp.ne.s32.totalorder %s135, %s137
      %p141 = scmp.eq.s32.totalorder %s17, 0
      %p142 = por %p140, %p141
      %p143 = scmp.ne.s32.totalorder %s135, %s137
      %p144 = scmp.eq.s32.totalorder %s22, 1
      %p145 = por %p143, %p144
      %p146 = scmp.ne.s32.totalorder %s137, %s138
      %p147 = scmp.eq.s32.totalorder %s22, 0
      %p148 = por %p146, %p147
      %p149 = scmp.ne.s32.totalorder %s137, %s138
      %p150 = scmp.eq.s32.totalorder %s23, 1
      %p151 = por %p149, %p150
      %p153 = scmp.ne.s32.totalorder %s138, %s152
      %p154 = scmp.eq.s32.totalorder %s23, 0
      %p155 = por %p153, %p154
      %s157 = sadd.s32 %s156, 1
      %p160 = scmp.eq.s32.totalorder %s17, 1
      %p161 = scmp.ne.s32.totalorder %s156, %s158
      %p162 = scmp.eq.s32.totalorder %s17, 0
      %p163 = por %p161, %p162
      %p164 = scmp.ne.s32.totalorder %s156, %s158
      %p165 = scmp.eq.s32.totalorder %s22, 1
      %p166 = por %p164, %p165
      %p167 = scmp.ne.s32.totalorder %s158, %s159
      %p168 = scmp.eq.s32.totalorder %s22, 0
      %p169 = por %p167, %p168
      %p170 = scmp.ne.s32.totalorder %s158, %s159
      %p171 = scmp.eq.s32.totalorder %s23, 1
      %p172 = por %p170, %p171
      %p174 = scmp.ne.s32.totalorder %s159, %s173
      %p175 = scmp.eq.s32.totalorder %s23, 0
      %p176 = por %p174, %p175
      %s178 = sadd.s32 %s177, 1
      %p181 = scmp.eq.s32.totalorder %s17, 1
      %p182 = scmp.ne.s32.totalorder %s177, %s179
      %p183 = scmp.eq.s32.totalorder %s17, 0
      %p184 = por %p182, %p183
      %p185 = scmp.ne.s32.totalorder %s177, %s179
      %p186 = scmp.eq.s32.totalorder %s22, 1
      %p187 = por %p185, %p186
      %p188 = scmp.ne.s32.totalorder %s179, %s180
      %p189 = scmp.eq.s32.totalorder %s22, 0
      %p190 = por %p188, %p189
      %p191 = scmp.ne.s32.totalorder %s179, %s180
      %p192 = scmp.eq.s32.totalorder %s23, 1
      %p193 = por %p191, %p192
      %p195 = scmp.ne.s32.totalorder %s180, %s194
      %p196 = scmp.eq.s32.totalorder %s23, 0
      %p197 = por %p195, %p196
      %s198 = ssub.s32 %s17, %s24
      %p199 = scmp.eq.s32.totalorder %s198, 0
      %s201 = sadd.s32 %s200, 1
      %s202 = scalar_select %p199, %s200, %s201
      %p205 = pneg %p199
      %p206 = scmp.eq.s32.totalorder %s17, 1
      %p207 = por %p205, %p206
      %p208 = scmp.ne.s32.totalorder %s200, %s203
      %p209 = scmp.eq.s32.totalorder %s17, 0
      %p210 = por %p208, %p209
      %p211 = scmp.ne.s32.totalorder %s200, %s203
      %p212 = scmp.eq.s32.totalorder %s22, 1
      %p213 = por %p211, %p212
      %p214 = scmp.ne.s32.totalorder %s203, %s204
      %p215 = scmp.eq.s32.totalorder %s22, 0
      %p216 = por %p214, %p215
      %p217 = scmp.ne.s32.totalorder %s203, %s204
      %p218 = scmp.eq.s32.totalorder %s23, 1
      %p219 = por %p217, %p218
      %p221 = scmp.ne.s32.totalorder %s204, %s220
      %p222 = scmp.eq.s32.totalorder %s23, 0
      %p223 = por %p221, %p222
      %p224 = scmp.le.s32.totalorder 1, %s17
      %p225 = scmp.lt.s32.totalorder %s17, 3
      %p226 = pnand %p224, %p225
      %p227 = pneg %p226
      // Predicated region
      $region9: #{self_attention_forward.1} parent=5 // pred_check
        _
      $region10: #{self_attention_forward.1} parent=5 // pred_check_branch
        %229 = sbr.rel (%p226) target = $region12
      $region11: #{self_attention_forward.1} parent=5 // pred_region
        %s230 = ssub.s32 %s17, 1
        // Predicated region
        $region13: #{self_attention_forward.1} parent=11 // pred_check
          %p231 = pneg %p64
        $region14: #{self_attention_forward.1} parent=11 // pred_check_branch
          %233 = sbr.rel (%p231) target = $region16
        $region15: #{self_attention_forward.1} parent=11 // pred_region
          _
        $region16: #{self_attention_forward.1} parent=11 // pred_fallthru
          _
        // Predicated region
        $region17: #{self_attention_forward.1} parent=11 // pred_check
          %p234 = pneg %p85
        $region18: #{self_attention_forward.1} parent=11 // pred_check_branch
          %236 = sbr.rel (%p234) target = $region20
        $region19: #{self_attention_forward.1} parent=11 // pred_region
          _
        $region20: #{self_attention_forward.1} parent=11 // pred_fallthru
          _
        // Predicated region
        $region21: #{self_attention_forward.1} parent=11 // pred_check
          %p237 = pneg %p106
        $region22: #{self_attention_forward.1} parent=11 // pred_check_branch
          %239 = sbr.rel (%p237) target = $region24
        $region23: #{self_attention_forward.1} parent=11 // pred_region
          _
        $region24: #{self_attention_forward.1} parent=11 // pred_fallthru
          _
        // Predicated region
        $region25: #{self_attention_forward.1} parent=11 // pred_check
          %p240 = pneg %p127
        $region26: #{self_attention_forward.1} parent=11 // pred_check_branch
          %242 = sbr.rel (%p240) target = $region28
        $region27: #{self_attention_forward.1} parent=11 // pred_region
          _
        $region28: #{self_attention_forward.1} parent=11 // pred_fallthru
          _
        // Predicated region
        $region29: #{self_attention_forward.1} parent=11 // pred_check
          %p243 = pneg %p148
        $region30: #{self_attention_forward.1} parent=11 // pred_check_branch
          %245 = sbr.rel (%p243) target = $region32
        $region31: #{self_attention_forward.1} parent=11 // pred_region
          _
        $region32: #{self_attention_forward.1} parent=11 // pred_fallthru
          _
        // Predicated region
        $region33: #{self_attention_forward.1} parent=11 // pred_check
          %p246 = pneg %p169
        $region34: #{self_attention_forward.1} parent=11 // pred_check_branch
          %248 = sbr.rel (%p246) target = $region36
        $region35: #{self_attention_forward.1} parent=11 // pred_region
          _
        $region36: #{self_attention_forward.1} parent=11 // pred_fallthru
          _
        // Predicated region
        $region37: #{self_attention_forward.1} parent=11 // pred_check
          %p249 = pneg %p190
        $region38: #{self_attention_forward.1} parent=11 // pred_check_branch
          %251 = sbr.rel (%p249) target = $region40
        $region39: #{self_attention_forward.1} parent=11 // pred_region
          _
        $region40: #{self_attention_forward.1} parent=11 // pred_fallthru
          _
      $region12: #{self_attention_forward.1} parent=5 // pred_fallthru
        _
      %p252 = scmp.lt.s32.totalorder %s17, 2
      // Predicated region
      $region41: #{self_attention_forward.1} parent=5 // pred_check
        %p253 = pneg %p252
      $region42: #{self_attention_forward.1} parent=5 // pred_check_branch
        %255 = sbr.rel (%p253) target = $region44
      $region43: #{self_attention_forward.1} parent=5 // pred_region
        // Predicated region
        $region45: #{self_attention_forward.1} parent=43 // pred_check
          %p256 = pneg %p37
        $region46: #{self_attention_forward.1} parent=43 // pred_check_branch
          %258 = sbr.rel (%p256) target = $region48
        $region47: #{self_attention_forward.1} parent=43 // pred_region
          %p259 = scmp.lt.s32.totalorder %s17, 1
          %s260 = scalar_select %p259, %s17, 1
          %s261 = smul.addr %s260, 8
          %s262 = smul.addr %s261, 8
          %s263 = scalar_lea.vmem %s0, %s262
        $region48: #{self_attention_forward.1} parent=43 // pred_fallthru
          _
      $region44: #{self_attention_forward.1} parent=5 // pred_fallthru
        _
      %p264 = scmp.le.s32.totalorder 1, %s17
      %p265 = scmp.lt.s32.totalorder %s17, 3
      %p266 = pnand %p264, %p265
      %p267 = pneg %p266
      // Predicated region
      $region49: #{self_attention_forward.1} parent=5 // pred_check
        _
      $region50: #{self_attention_forward.1} parent=5 // pred_check_branch
        %269 = sbr.rel (%p266) target = $region52
      $region51: #{self_attention_forward.1} parent=5 // pred_region
        %s270 = ssub.s32 %s17, 1
        %p271 = scmp.lt.s32.totalorder %s22, 1
        %s272 = scalar_select %p271, %s22, 1
        %s273 = smul.addr %s272, 8
        %s274 = smul.addr %s273, 8
        %s275 = scalar_lea.vmem %s0, %s274
        %p276 = pneg %p43
        %p277 = pneg %p40
        %p278 = pneg %p64
        %p279 = pneg %p61
        %p280 = pneg %p85
        %p281 = pneg %p82
        %p282 = pneg %p106
        %p283 = pneg %p103
        %p284 = pneg %p127
        %p285 = pneg %p124
        %p286 = pneg %p148
        %p287 = pneg %p145
        %p288 = pneg %p169
        %p289 = pneg %p166
        %p290 = pneg %p190
        %p291 = pneg %p187
        %p292 = pneg %p216
        %p293 = pneg %p213
        %s294 = sand.u32 %s203, 1
        %s295 = scalar_lea.sflag [#allocation3], %s294
        %s296 = sand.u32 %s203, 1
        %s297 = smul.addr %s296, 64
        %s298 = scalar_lea.vmem [#allocation2], %s297
        %p299 = scmp.lt.s32.totalorder %s22, 1
        %s300 = scalar_select %p299, %s22, 1
        %s301 = smul.addr %s300, 8
        %s302 = smul.addr %s301, 8
        %s303 = scalar_lea.vmem %s0, %s302
        %v305 = vld [vmem:[%s303] sm:$0xff]
        %v306 = vld [vmem:[%s303 + $0x8] sm:$0xff]
        %v307 = vld [vmem:[%s303 + $0x10] sm:$0xff]
        %v308 = vld [vmem:[%s303 + $0x18] sm:$0xff]
        %v309 = vld [vmem:[%s303 + $0x20] sm:$0xff]
        %v310 = vld [vmem:[%s303 + $0x28] sm:$0xff]
        %v311 = vld [vmem:[%s303 + $0x30] sm:$0xff]
        %v312 = vld [vmem:[%s303 + $0x38] sm:$0xff]
        %v313 = vadd.f32 %v305, %v306
        %v314 = vadd.f32 %v313, %v307
        %v315 = vadd.f32 %v314, %v308
        %v316 = vadd.f32 %v315, %v309
        %v317 = vadd.f32 %v316, %v310
        %v318 = vadd.f32 %v317, %v311
        %v319 = vadd.f32 %v318, %v312
        %v320 = vrot.slane %v319, 4
        %v321 = vadd.f32 %v319, %v320
        %v322 = vrot.slane %v321, 2
        %v323 = vadd.f32 %v321, %v322
        %v324 = vrot.slane %v323, 1
        %v325 = vadd.f32 %v323, %v324
        %v326 = vmul.f32 %v305, %v305
        %v327 = vmul.f32 %v306, %v306
        %v328 = vmul.f32 %v307, %v307
        %v329 = vmul.f32 %v308, %v308
        %v330 = vmul.f32 %v309, %v309
        %v331 = vmul.f32 %v310, %v310
        %v332 = vmul.f32 %v311, %v311
        %v333 = vmul.f32 %v312, %v312
        %v334 = vadd.f32 %v326, %v327
        %v335 = vadd.f32 %v334, %v328
        %v336 = vadd.f32 %v335, %v329
        %v337 = vadd.f32 %v336, %v330
        %v338 = vadd.f32 %v337, %v331
        %v339 = vadd.f32 %v338, %v332
        %v340 = vadd.f32 %v339, %v333
        %v341 = vrot.slane %v340, 4
        %v342 = vadd.f32 %v340, %v341
        %v343 = vrot.slane %v342, 2
        %v344 = vadd.f32 %v342, %v343
        %v345 = vrot.slane %v344, 1
        %v346 = vadd.f32 %v344, %v345
        %v347 = vld [vmem:[%s2] sm:$0xff]
        %v348 = vld [vmem:[%s2 + $0x8] sm:$0xff]
        %v349 = vld [vmem:[%s2 + $0x10] sm:$0xff]
        %v350 = vld [vmem:[%s2 + $0x18] sm:$0xff]
        %v351 = vld [vmem:[%s2 + $0x20] sm:$0xff]
        %v352 = vld [vmem:[%s2 + $0x28] sm:$0xff]
        %v353 = vld [vmem:[%s2 + $0x30] sm:$0xff]
        %v354 = vld [vmem:[%s2 + $0x38] sm:$0xff]
        %v355 = vld [vmem:[%s2 + $0x40] sm:$0xff]
        %v356 = vld [vmem:[%s2 + $0x48] sm:$0xff]
        %v357 = vld [vmem:[%s2 + $0x50] sm:$0xff]
        %v358 = vld [vmem:[%s2 + $0x58] sm:$0xff]
        %v359 = vld [vmem:[%s2 + $0x60] sm:$0xff]
        %v360 = vld [vmem:[%s2 + $0x68] sm:$0xff]
        %v361 = vld [vmem:[%s2 + $0x70] sm:$0xff]
        %v362 = vld [vmem:[%s2 + $0x78] sm:$0xff]
        %363 = vmatpush.msra.mxu0 %v362
        %364 = vmatpush.msra.mxu0 %v361
        %365 = vmatpush.msra.mxu0 %v360
        %366 = vmatpush.msra.mxu0 %v359
        %367 = vmatpush.msra.mxu0 %v358
        %368 = vmatpush.msra.mxu0 %v357
        %369 = vmatpush.msra.mxu0 %v356
        %370 = vmatpush.msra.mxu0 %v355
        %371 = vmatpush.msra.mxu0 %v354
        %372 = vmatpush.msra.mxu0 %v353
        %373 = vmatpush.msra.mxu0 %v352
        %374 = vmatpush.msra.mxu0 %v351
        %375 = vmatpush.msra.mxu0 %v350
        %376 = vmatpush.msra.mxu0 %v349
        %377 = vmatpush.msra.mxu0 %v348
        %378 = vmatpush.msra.mxu0 %v347
        %379 = vmatmul.f32.gmra.mxu0 %v325
        %v380 = vpop.f32.mrf.mxu0
        %v381 = vadd.f32 0.0, %v380
        %382 = vdwg.mxu0
        %383 = vmatpush.msra.mxu0 %v362
        %384 = vmatpush.msra.mxu0 %v361
        %385 = vmatpush.msra.mxu0 %v360
        %386 = vmatpush.msra.mxu0 %v359
        %387 = vmatpush.msra.mxu0 %v358
        %388 = vmatpush.msra.mxu0 %v357
        %389 = vmatpush.msra.mxu0 %v356
        %390 = vmatpush.msra.mxu0 %v355
        %391 = vmatpush.msra.mxu0 %v354
        %392 = vmatpush.msra.mxu0 %v353
        %393 = vmatpush.msra.mxu0 %v352
        %394 = vmatpush.msra.mxu0 %v351
        %395 = vmatpush.msra.mxu0 %v350
        %396 = vmatpush.msra.mxu0 %v349
        %397 = vmatpush.msra.mxu0 %v348
        %398 = vmatpush.msra.mxu0 %v347
        %399 = vmatmul.f32.gmra.mxu0 %v346
        %v400 = vpop.f32.mrf.mxu0
        %v401 = vadd.f32 0.0, %v400
        %402 = vdwg.mxu0
        %v403 = vmul.f32 %v381, 0.00390625
        %v404 = vmul.f32 %v401, 0.00390625
        %v405 = vmul.f32 %v403, %v403
        %v406 = vsub.f32 %v404, %v405
        %v407 = vadd.f32 %v406, 1e-05
        %v408 = vrsqrt.pop %v407
        %v409 = vmul.f32 %v408, %v407
        %v410 = vmul.f32 %v409, %v408
        %v411 = vmul.f32 0.5, %v410
        %v412 = vsub.f32 1.5, %v411
        %v413 = vmul.f32 %v408, %v412
        %vm414 = vweird.f32 %v407
        %vm415 = vweird.f32 %v408
        %vm416 = vmor %vm414, %vm415
        %v417 = vsel %vm416, %v408, %v413
        %v418 = vld [vmem:[%s1] sm:$0xff]
        %v419 = vld [vmem:[%s1 + $0x8] sm:$0xff]
        %v420 = vld [vmem:[%s1 + $0x10] sm:$0xff]
        %v421 = vld [vmem:[%s1 + $0x18] sm:$0xff]
        %vm422 = vcmask 261120
        %v424 = vsel %vm422, %v403, 0
        %426 = vmatpush.msra.mxu0 0.0
        %427 = vmatpush.msra.mxu0 0.0
        %428 = vmatpush.msra.mxu0 0.0
        %429 = vmatpush.msra.mxu0 0.0
        %430 = vmatpush.msra.mxu0 0.0
        %431 = vmatpush.msra.mxu0 0.0
        %432 = vmatpush.msra.mxu0 0.0
        %433 = vmatpush.msra.mxu0 0.0
        %434 = vmatpush.msra.mxu0 0.0
        %435 = vmatpush.msra.mxu0 0.0
        %436 = vmatpush.msra.mxu0 0.0
        %437 = vmatpush.msra.mxu0 0.0
        %438 = vmatpush.msra.mxu0 %v421
        %439 = vmatpush.msra.mxu0 %v420
        %440 = vmatpush.msra.mxu0 %v419
        %441 = vmatpush.msra.mxu0 %v418
        %442 = vmatmul.f32.gmra.mxu0 %v424
        %v443 = vpop.f32.mrf.mxu0
        %v444 = vadd.f32 0.0, %v443
        %445 = vdwg.mxu0
        %v447 = vsel %vm422, %v417, 0
        %449 = vmatpush.msra.mxu0 0.0
        %450 = vmatpush.msra.mxu0 0.0
        %451 = vmatpush.msra.mxu0 0.0
        %452 = vmatpush.msra.mxu0 0.0
        %453 = vmatpush.msra.mxu0 0.0
        %454 = vmatpush.msra.mxu0 0.0
        %455 = vmatpush.msra.mxu0 0.0
        %456 = vmatpush.msra.mxu0 0.0
        %457 = vmatpush.msra.mxu0 0.0
        %458 = vmatpush.msra.mxu0 0.0
        %459 = vmatpush.msra.mxu0 0.0
        %460 = vmatpush.msra.mxu0 0.0
        %461 = vmatpush.msra.mxu0 %v421
        %462 = vmatpush.msra.mxu0 %v420
        %463 = vmatpush.msra.mxu0 %v419
        %464 = vmatpush.msra.mxu0 %v418
        %465 = vmatmul.f32.gmra.mxu0 %v447
        %v466 = vpop.f32.mrf.mxu0
        %v467 = vadd.f32 0.0, %v466
        %468 = vdwg.mxu0
        %v469 = vld [vmem:[%s3] sm:$0x1]
        %v470 = vmul.f32 %v467, %v469
        %v471 = vld [vmem:[%s4] sm:$0x1]
        %v472 = vmul.f32 %v444, %v470
        %v473 = vsub.f32 %v471, %v472
        %v474 = vperm.slane %v470, 0
        %v475 = vmul.f32 %v305, %v474
        %v476 = vmul.f32 %v306, %v474
        %v477 = vmul.f32 %v307, %v474
        %v478 = vmul.f32 %v308, %v474
        %v479 = vmul.f32 %v309, %v474
        %v480 = vmul.f32 %v310, %v474
        %v481 = vmul.f32 %v311, %v474
        %v482 = vmul.f32 %v312, %v474
        %v484 = vperm.slane %v473, 0
        %v486 = vadd.f32 %v475, %v484
        %v487 = vadd.f32 %v476, %v484
        %v488 = vadd.f32 %v477, %v484
        %v489 = vadd.f32 %v478, %v484
        %v490 = vadd.f32 %v479, %v484
        %v491 = vadd.f32 %v480, %v484
        %v492 = vadd.f32 %v481, %v484
        %v493 = vadd.f32 %v482, %v484
        %v494 = vpack.c.bf16 %v487, %v486
        %v495 = vpack.c.bf16 %v489, %v488
        %v496 = vpack.c.bf16 %v491, %v490
        %v497 = vpack.c.bf16 %v493, %v492
        %v498 = vld [vmem:[%s5] sm:$0xff]
        %v499 = vld [vmem:[%s5 + $0x8] sm:$0xf]
        %v500 = vld [vmem:[%s5 + $0xc] sm:$0xff]
        %v501 = vld [vmem:[%s5 + $0x14] sm:$0xf]
        %v502 = vld [vmem:[%s5 + $0x18] sm:$0xff]
        %v503 = vld [vmem:[%s5 + $0x20] sm:$0xf]
        %v504 = vld [vmem:[%s5 + $0x24] sm:$0xff]
        %v505 = vld [vmem:[%s5 + $0x2c] sm:$0xf]
        %v506 = vld [vmem:[%s5 + $0x30] sm:$0xff]
        %v507 = vld [vmem:[%s5 + $0x38] sm:$0xf]
        %v508 = vld [vmem:[%s5 + $0x3c] sm:$0xff]
        %v509 = vld [vmem:[%s5 + $0x44] sm:$0xf]
        %v510 = vld [vmem:[%s5 + $0x48] sm:$0xff]
        %v511 = vld [vmem:[%s5 + $0x50] sm:$0xf]
        %v512 = vld [vmem:[%s5 + $0x54] sm:$0xff]
        %v513 = vld [vmem:[%s5 + $0x5c] sm:$0xf]
        %v514 = vld [vmem:[%s5 + $0x60] sm:$0xff]
        %v515 = vld [vmem:[%s5 + $0x68] sm:$0xf]
        %v516 = vld [vmem:[%s5 + $0x6c] sm:$0xff]
        %v517 = vld [vmem:[%s5 + $0x74] sm:$0xf]
        %v518 = vld [vmem:[%s5 + $0x78] sm:$0xff]
        %v519 = vld [vmem:[%s5 + $0x80] sm:$0xf]
        %v520 = vld [vmem:[%s5 + $0x84] sm:$0xff]
        %v521 = vld [vmem:[%s5 + $0x8c] sm:$0xf]
        %v522 = vld [vmem:[%s5 + $0x90] sm:$0xff]
        %v523 = vld [vmem:[%s5 + $0x98] sm:$0xf]
        %v524 = vld [vmem:[%s5 + $0x9c] sm:$0xff]
        %v525 = vld [vmem:[%s5 + $0xa4] sm:$0xf]
        %v526 = vld [vmem:[%s5 + $0xa8] sm:$0xff]
        %v527 = vld [vmem:[%s5 + $0xb0] sm:$0xf]
        %v528 = vld [vmem:[%s5 + $0xb4] sm:$0xff]
        %v529 = vld [vmem:[%s5 + $0xbc] sm:$0xf]
        %v562 = vunpack.c.l.b16 %v498
        %v563 = vunpack.c.h.b16 %v498
        %v564 = vunpack.c.l.b16 %v499
        %v565 = vunpack.c.l.b16 %v500
        %v566 = vunpack.c.h.b16 %v500
        %v567 = vunpack.c.l.b16 %v501
        %v568 = vunpack.c.l.b16 %v502
        %v569 = vunpack.c.h.b16 %v502
        %v570 = vunpack.c.l.b16 %v503
        %v571 = vunpack.c.l.b16 %v504
        %v572 = vunpack.c.h.b16 %v504
        %v573 = vunpack.c.l.b16 %v505
        %v574 = vunpack.c.l.b16 %v506
        %v575 = vunpack.c.h.b16 %v506
        %v576 = vunpack.c.l.b16 %v507
        %v577 = vunpack.c.l.b16 %v508
        %v578 = vunpack.c.h.b16 %v508
        %v579 = vunpack.c.l.b16 %v509
        %v580 = vunpack.c.l.b16 %v510
        %v581 = vunpack.c.h.b16 %v510
        %v582 = vunpack.c.l.b16 %v511
        %v583 = vunpack.c.l.b16 %v512
        %v584 = vunpack.c.h.b16 %v512
        %v585 = vunpack.c.l.b16 %v513
        %v586 = vunpack.c.l.b16 %v514
        %v587 = vunpack.c.h.b16 %v514
        %v588 = vunpack.c.l.b16 %v515
        %v589 = vunpack.c.l.b16 %v516
        %v590 = vunpack.c.h.b16 %v516
        %v591 = vunpack.c.l.b16 %v517
        %v592 = vunpack.c.l.b16 %v518
        %v593 = vunpack.c.h.b16 %v518
        %v594 = vunpack.c.l.b16 %v519
        %v595 = vunpack.c.l.b16 %v520
        %v596 = vunpack.c.h.b16 %v520
        %v597 = vunpack.c.l.b16 %v521
        %v598 = vunpack.c.l.b16 %v522
        %v599 = vunpack.c.h.b16 %v522
        %v600 = vunpack.c.l.b16 %v523
        %v601 = vunpack.c.l.b16 %v524
        %v602 = vunpack.c.h.b16 %v524
        %v603 = vunpack.c.l.b16 %v525
        %v604 = vunpack.c.l.b16 %v526
        %v605 = vunpack.c.h.b16 %v526
        %v606 = vunpack.c.l.b16 %v527
        %v607 = vunpack.c.l.b16 %v528
        %v608 = vunpack.c.h.b16 %v528
        %v609 = vunpack.c.l.b16 %v529
        %v610 = vpack.c.b16 %v565, %v562
        %v611 = vpack.c.b16 %v566, %v563
        %v612 = vpack.c.b16 %v567, %v564
        %v613 = vpack.c.b16 %v571, %v568
        %v614 = vpack.c.b16 %v572, %v569
        %v615 = vpack.c.b16 %v573, %v570
        %v616 = vpack.c.b16 %v577, %v574
        %v617 = vpack.c.b16 %v578, %v575
        %v618 = vpack.c.b16 %v579, %v576
        %v619 = vpack.c.b16 %v583, %v580
        %v620 = vpack.c.b16 %v584, %v581
        %v621 = vpack.c.b16 %v585, %v582
        %v622 = vpack.c.b16 %v589, %v586
        %v623 = vpack.c.b16 %v590, %v587
        %v624 = vpack.c.b16 %v591, %v588
        %v625 = vpack.c.b16 %v595, %v592
        %v626 = vpack.c.b16 %v596, %v593
        %v627 = vpack.c.b16 %v597, %v594
        %v628 = vpack.c.b16 %v601, %v598
        %v629 = vpack.c.b16 %v602, %v599
        %v630 = vpack.c.b16 %v603, %v600
        %v631 = vpack.c.b16 %v607, %v604
        %v632 = vpack.c.b16 %v608, %v605
        %v633 = vpack.c.b16 %v609, %v606
        %658 = vmatpush.bf16.msra.mxu0 %v631
        %659 = vmatpush.bf16.msra.mxu0 %v628
        %660 = vmatpush.bf16.msra.mxu0 %v625
        %661 = vmatpush.bf16.msra.mxu0 %v622
        %662 = vmatpush.bf16.msra.mxu0 %v619
        %663 = vmatpush.bf16.msra.mxu0 %v616
        %664 = vmatpush.bf16.msra.mxu0 %v613
        %665 = vmatpush.bf16.msra.mxu0 %v610
        %666 = vmatmul.bf16.gmra.mxu0 %v494
        %v667 = vpop.f32.mrf.mxu0
        %v668 = vadd.f32 0.0, %v667
        %v669 = vpop.f32.mrf.mxu0
        %v670 = vadd.f32 0.0, %v669
        %671 = vmatmul.bf16.gmra.mxu0 %v495
        %v672 = vpop.f32.mrf.mxu0
        %v673 = vadd.f32 0.0, %v672
        %v674 = vpop.f32.mrf.mxu0
        %v675 = vadd.f32 0.0, %v674
        %676 = vmatmul.bf16.gmra.mxu0 %v496
        %v677 = vpop.f32.mrf.mxu0
        %v678 = vadd.f32 0.0, %v677
        %v679 = vpop.f32.mrf.mxu0
        %v680 = vadd.f32 0.0, %v679
        %681 = vmatmul.bf16.gmra.mxu0 %v497
        %v682 = vpop.f32.mrf.mxu0
        %v683 = vadd.f32 0.0, %v682
        %v684 = vpop.f32.mrf.mxu0
        %v685 = vadd.f32 0.0, %v684
        %686 = vdwg.mxu0
        %687 = vmatpush.bf16.msra.mxu0 %v632
        %688 = vmatpush.bf16.msra.mxu0 %v629
        %689 = vmatpush.bf16.msra.mxu0 %v626
        %690 = vmatpush.bf16.msra.mxu0 %v623
        %691 = vmatpush.bf16.msra.mxu0 %v620
        %692 = vmatpush.bf16.msra.mxu0 %v617
        %693 = vmatpush.bf16.msra.mxu0 %v614
        %694 = vmatpush.bf16.msra.mxu0 %v611
        %695 = vmatmul.bf16.gmra.mxu0 %v494
        %v696 = vpop.f32.mrf.mxu0
        %v697 = vadd.f32 0.0, %v696
        %v698 = vpop.f32.mrf.mxu0
        %v699 = vadd.f32 0.0, %v698
        %700 = vmatmul.bf16.gmra.mxu0 %v495
        %v701 = vpop.f32.mrf.mxu0
        %v702 = vadd.f32 0.0, %v701
        %v703 = vpop.f32.mrf.mxu0
        %v704 = vadd.f32 0.0, %v703
        %705 = vmatmul.bf16.gmra.mxu0 %v496
        %v706 = vpop.f32.mrf.mxu0
        %v707 = vadd.f32 0.0, %v706
        %v708 = vpop.f32.mrf.mxu0
        %v709 = vadd.f32 0.0, %v708
        %710 = vmatmul.bf16.gmra.mxu0 %v497
        %v711 = vpop.f32.mrf.mxu0
        %v712 = vadd.f32 0.0, %v711
        %v713 = vpop.f32.mrf.mxu0
        %v714 = vadd.f32 0.0, %v713
        %715 = vdwg.mxu0
        %716 = vmatpush.bf16.msra.mxu0 %v633
        %717 = vmatpush.bf16.msra.mxu0 %v630
        %718 = vmatpush.bf16.msra.mxu0 %v627
        %719 = vmatpush.bf16.msra.mxu0 %v624
        %720 = vmatpush.bf16.msra.mxu0 %v621
        %721 = vmatpush.bf16.msra.mxu0 %v618
        %722 = vmatpush.bf16.msra.mxu0 %v615
        %723 = vmatpush.bf16.msra.mxu0 %v612
        %724 = vmatmul.bf16.gmra.mxu0 %v494
        %v725 = vpop.f32.mrf.mxu0
        %v726 = vadd.f32 0.0, %v725
        %v727 = vpop.f32.mrf.mxu0
        %v728 = vadd.f32 0.0, %v727
        %729 = vmatmul.bf16.gmra.mxu0 %v495
        %v730 = vpop.f32.mrf.mxu0
        %v731 = vadd.f32 0.0, %v730
        %v732 = vpop.f32.mrf.mxu0
        %v733 = vadd.f32 0.0, %v732
        %734 = vmatmul.bf16.gmra.mxu0 %v496
        %v735 = vpop.f32.mrf.mxu0
        %v736 = vadd.f32 0.0, %v735
        %v737 = vpop.f32.mrf.mxu0
        %v738 = vadd.f32 0.0, %v737
        %739 = vmatmul.bf16.gmra.mxu0 %v497
        %v740 = vpop.f32.mrf.mxu0
        %v741 = vadd.f32 0.0, %v740
        %v742 = vpop.f32.mrf.mxu0
        %v743 = vadd.f32 0.0, %v742
        %744 = vdwg.mxu0
        %v745 = vmul.f32 %v668, 0.088388346
        %v746 = vmul.f32 %v670, 0.088388346
        %v747 = vmul.f32 %v673, 0.088388346
        %v748 = vmul.f32 %v675, 0.088388346
        %v749 = vmul.f32 %v678, 0.088388346
        %v750 = vmul.f32 %v680, 0.088388346
        %v751 = vmul.f32 %v683, 0.088388346
        %v752 = vmul.f32 %v685, 0.088388346
        %v753 = vpack.c.bf16 %v746, %v745
        %v754 = vpack.c.bf16 %v748, %v747
        %v755 = vpack.c.bf16 %v750, %v749
        %v756 = vpack.c.bf16 %v752, %v751
        %v757 = vpack.c.bf16 %v670, %v668
        %v758 = vpack.c.bf16 %v675, %v673
        %v759 = vpack.c.bf16 %v680, %v678
        %v760 = vpack.c.bf16 %v685, %v683
        %v761 = vpack.c.bf16 %v699, %v697
        %v762 = vpack.c.bf16 %v704, %v702
        %v763 = vpack.c.bf16 %v709, %v707
        %v764 = vpack.c.bf16 %v714, %v712
        %769 = vrot.lane.b32.xlu0 %v757, 64
        %v770 = vpop.permute.xlu0 %769
        %771 = vrot.lane.b32.xlu0 %v758, 64
        %v772 = vpop.permute.xlu0 %771
        %773 = vrot.lane.b32.xlu0 %v759, 64
        %v774 = vpop.permute.xlu0 %773
        %775 = vrot.lane.b32.xlu0 %v760, 64
        %v776 = vpop.permute.xlu0 %775
        %vm777 = vcmask 523264
        %v779 = vsel %vm777, %v753, 0
        %v782 = vsel %vm777, %v754, 0
        %v785 = vsel %vm777, %v755, 0
        %v788 = vsel %vm777, %v756, 0
        %v791 = vsel %vm777, %v770, 0
        %v794 = vsel %vm777, %v772, 0
        %v797 = vsel %vm777, %v774, 0
        %v800 = vsel %vm777, %v776, 0
        %802 = vmatpush.bf16.xpose.msra.mxu0 0
        %803 = vmatpush.bf16.xpose.msra.mxu0 0
        %804 = vmatpush.bf16.xpose.msra.mxu0 0
        %805 = vmatpush.bf16.xpose.msra.mxu0 0
        %806 = vmatpush.bf16.xpose.msra.mxu0 %v800
        %807 = vmatpush.bf16.xpose.msra.mxu0 %v797
        %808 = vmatpush.bf16.xpose.msra.mxu0 %v794
        %809 = vmatpush.bf16.xpose.msra.mxu0 %v791
        %810 = vmatmul.bf16.gmra.mxu0 %v779
        %v811 = vpop.f32.mrf.mxu0
        %v812 = vadd.f32 0.0, %v811
        %v813 = vpop.f32.mrf.mxu0
        %v814 = vadd.f32 0.0, %v813
        %815 = vmatmul.bf16.gmra.mxu0 %v782
        %v816 = vpop.f32.mrf.mxu0
        %v817 = vadd.f32 0.0, %v816
        %v818 = vpop.f32.mrf.mxu0
        %v819 = vadd.f32 0.0, %v818
        %820 = vmatmul.bf16.gmra.mxu0 %v785
        %v821 = vpop.f32.mrf.mxu0
        %v822 = vadd.f32 0.0, %v821
        %v823 = vpop.f32.mrf.mxu0
        %v824 = vadd.f32 0.0, %v823
        %825 = vmatmul.bf16.gmra.mxu0 %v788
        %v826 = vpop.f32.mrf.mxu0
        %v827 = vadd.f32 0.0, %v826
        %v828 = vpop.f32.mrf.mxu0
        %v829 = vadd.f32 0.0, %v828
        %830 = vdwg.mxu0
        %v831 = vsel %vm777, %v812, -inf
        %832 = vmax.xlane.f32.xlu0 %v831
        %v833 = vpop.xlane.xlu0 %832
        %v834 = vsel %vm777, %v814, -inf
        %835 = vmax.xlane.f32.xlu0 %v834
        %v836 = vpop.xlane.xlu0 %835
        %v837 = vsel %vm777, %v817, -inf
        %838 = vmax.xlane.f32.xlu0 %v837
        %v839 = vpop.xlane.xlu0 %838
        %v840 = vsel %vm777, %v819, -inf
        %841 = vmax.xlane.f32.xlu0 %v840
        %v842 = vpop.xlane.xlu0 %841
        %v843 = vsel %vm777, %v822, -inf
        %844 = vmax.xlane.f32.xlu0 %v843
        %v845 = vpop.xlane.xlu0 %844
        %v846 = vsel %vm777, %v824, -inf
        %847 = vmax.xlane.f32.xlu0 %v846
        %v848 = vpop.xlane.xlu0 %847
        %v849 = vsel %vm777, %v827, -inf
        %850 = vmax.xlane.f32.xlu0 %v849
        %v851 = vpop.xlane.xlu0 %850
        %v852 = vsel %vm777, %v829, -inf
        %853 = vmax.xlane.f32.xlu0 %v852
        %v854 = vpop.xlane.xlu0 %853
        %v855 = vsub.f32 %v812, %v833
        %v856 = vsub.f32 %v814, %v836
        %v857 = vsub.f32 %v817, %v839
        %v858 = vsub.f32 %v819, %v842
        %v859 = vsub.f32 %v822, %v845
        %v860 = vsub.f32 %v824, %v848
        %v861 = vsub.f32 %v827, %v851
        %v862 = vsub.f32 %v829, %v854
        %v863 = vmul.f32 %v855, 1.442695
        %v864 = vpow.pop %v863
        %v865 = vmul.f32 %v856, 1.442695
        %v866 = vpow.pop %v865
        %v867 = vmul.f32 %v857, 1.442695
        %v868 = vpow.pop %v867
        %v869 = vmul.f32 %v858, 1.442695
        %v870 = vpow.pop %v869
        %v871 = vmul.f32 %v859, 1.442695
        %v872 = vpow.pop %v871
        %v873 = vmul.f32 %v860, 1.442695
        %v874 = vpow.pop %v873
        %v875 = vmul.f32 %v861, 1.442695
        %v876 = vpow.pop %v875
        %v877 = vmul.f32 %v862, 1.442695
        %v878 = vpow.pop %v877
        %v879 = vsel %vm777, %v864, 0.0
        %880 = vadd.xlane.f32.xlu0 %v879
        %v881 = vpop.xlane.xlu0 %880
        %v882 = vsel %vm777, %v866, 0.0
        %883 = vadd.xlane.f32.xlu0 %v882
        %v884 = vpop.xlane.xlu0 %883
        %v885 = vsel %vm777, %v868, 0.0
        %886 = vadd.xlane.f32.xlu0 %v885
        %v887 = vpop.xlane.xlu0 %886
        %v888 = vsel %vm777, %v870, 0.0
        %889 = vadd.xlane.f32.xlu0 %v888
        %v890 = vpop.xlane.xlu0 %889
        %v891 = vsel %vm777, %v872, 0.0
        %892 = vadd.xlane.f32.xlu0 %v891
        %v893 = vpop.xlane.xlu0 %892
        %v894 = vsel %vm777, %v874, 0.0
        %895 = vadd.xlane.f32.xlu0 %v894
        %v896 = vpop.xlane.xlu0 %895
        %v897 = vsel %vm777, %v876, 0.0
        %898 = vadd.xlane.f32.xlu0 %v897
        %v899 = vpop.xlane.xlu0 %898
        %v900 = vsel %vm777, %v878, 0.0
        %901 = vadd.xlane.f32.xlu0 %v900
        %v902 = vpop.xlane.xlu0 %901
        %v903 = vrcp.pop %v881
        %v904 = vrcp.pop %v884
        %v905 = vrcp.pop %v887
        %v906 = vrcp.pop %v890
        %v907 = vrcp.pop %v893
        %v908 = vrcp.pop %v896
        %v909 = vrcp.pop %v899
        %v910 = vrcp.pop %v902
        %v911 = vmul.f32 %v864, %v903
        %v912 = vmul.f32 %v866, %v904
        %v913 = vmul.f32 %v868, %v905
        %v914 = vmul.f32 %v870, %v906
        %v915 = vmul.f32 %v872, %v907
        %v916 = vmul.f32 %v874, %v908
        %v917 = vmul.f32 %v876, %v909
        %v918 = vmul.f32 %v878, %v910
        %v919 = vpack.c.bf16 %v912, %v911
        %v920 = vpack.c.bf16 %v914, %v913
        %v921 = vpack.c.bf16 %v916, %v915
        %v922 = vpack.c.bf16 %v918, %v917
        %v924 = vsel %vm777, %v919, 0
        %v927 = vsel %vm777, %v920, 0
        %v930 = vsel %vm777, %v921, 0
        %v933 = vsel %vm777, %v922, 0
        %935 = vmatpush.bf16.msra.mxu0 0
        %936 = vmatpush.bf16.msra.mxu0 0
        %937 = vmatpush.bf16.msra.mxu0 0
        %938 = vmatpush.bf16.msra.mxu0 0
        %939 = vmatpush.bf16.msra.mxu0 %v764
        %940 = vmatpush.bf16.msra.mxu0 %v763
        %941 = vmatpush.bf16.msra.mxu0 %v762
        %942 = vmatpush.bf16.msra.mxu0 %v761
        %943 = vmatmul.bf16.gmra.mxu0 %v924
        %v944 = vpop.f32.mrf.mxu0
        %v945 = vadd.f32 0.0, %v944
        %v946 = vpop.f32.mrf.mxu0
        %v947 = vadd.f32 0.0, %v946
        %948 = vmatmul.bf16.gmra.mxu0 %v927
        %v949 = vpop.f32.mrf.mxu0
        %v950 = vadd.f32 0.0, %v949
        %v951 = vpop.f32.mrf.mxu0
        %v952 = vadd.f32 0.0, %v951
        %953 = vmatmul.bf16.gmra.mxu0 %v930
        %v954 = vpop.f32.mrf.mxu0
        %v955 = vadd.f32 0.0, %v954
        %v956 = vpop.f32.mrf.mxu0
        %v957 = vadd.f32 0.0, %v956
        %958 = vmatmul.bf16.gmra.mxu0 %v933
        %v959 = vpop.f32.mrf.mxu0
        %v960 = vadd.f32 0.0, %v959
        %v961 = vpop.f32.mrf.mxu0
        %v962 = vadd.f32 0.0, %v961
        %963 = vdwg.mxu0
        %v964 = vpack.c.bf16 %v947, %v945
        %v965 = vpack.c.bf16 %v952, %v950
        %v966 = vpack.c.bf16 %v957, %v955
        %v967 = vpack.c.bf16 %v962, %v960
        %v968 = vld [vmem:[%s6] sm:$0xf]
        %v969 = vld [vmem:[%s6 + $0x4] sm:$0xf]
        %v970 = vld [vmem:[%s6 + $0x8] sm:$0xf]
        %v971 = vld [vmem:[%s6 + $0xc] sm:$0xf]
        %v972 = vld [vmem:[%s6 + $0x10] sm:$0xf]
        %v973 = vld [vmem:[%s6 + $0x14] sm:$0xf]
        %v974 = vld [vmem:[%s6 + $0x18] sm:$0xf]
        %v975 = vld [vmem:[%s6 + $0x1c] sm:$0xf]
        %v976 = vmul.f32 %v697, 0.088388346
        %v977 = vmul.f32 %v699, 0.088388346
        %v978 = vmul.f32 %v702, 0.088388346
        %v979 = vmul.f32 %v704, 0.088388346
        %v980 = vmul.f32 %v707, 0.088388346
        %v981 = vmul.f32 %v709, 0.088388346
        %v982 = vmul.f32 %v712, 0.088388346
        %v983 = vmul.f32 %v714, 0.088388346
        %v984 = vpack.c.bf16 %v977, %v976
        %v985 = vpack.c.bf16 %v979, %v978
        %v986 = vpack.c.bf16 %v981, %v980
        %v987 = vpack.c.bf16 %v983, %v982
        %v988 = vpack.c.bf16 %v728, %v726
        %v989 = vpack.c.bf16 %v733, %v731
        %v990 = vpack.c.bf16 %v738, %v736
        %v991 = vpack.c.bf16 %v743, %v741
        %996 = vrot.lane.b32.xlu0 %v984, 64
        %v997 = vpop.permute.xlu0 %996
        %998 = vrot.lane.b32.xlu0 %v985, 64
        %v999 = vpop.permute.xlu0 %998
        %1000 = vrot.lane.b32.xlu0 %v986, 64
        %v1001 = vpop.permute.xlu0 %1000
        %1002 = vrot.lane.b32.xlu0 %v987, 64
        %v1003 = vpop.permute.xlu0 %1002
        %v1005 = vsel %vm777, %v997, 0
        %v1008 = vsel %vm777, %v999, 0
        %v1011 = vsel %vm777, %v1001, 0
        %v1014 = vsel %vm777, %v1003, 0
        %v1017 = vsel %vm777, %v988, 0
        %v1020 = vsel %vm777, %v989, 0
        %v1023 = vsel %vm777, %v990, 0
        %v1026 = vsel %vm777, %v991, 0
        %1028 = vmatpush.bf16.xpose.msra.mxu0 0
        %1029 = vmatpush.bf16.xpose.msra.mxu0 0
        %1030 = vmatpush.bf16.xpose.msra.mxu0 0
        %1031 = vmatpush.bf16.xpose.msra.mxu0 0
        %1032 = vmatpush.bf16.xpose.msra.mxu0 %v1026
        %1033 = vmatpush.bf16.xpose.msra.mxu0 %v1023
        %1034 = vmatpush.bf16.xpose.msra.mxu0 %v1020
        %1035 = vmatpush.bf16.xpose.msra.mxu0 %v1017
        %1036 = vmatmul.bf16.gmra.mxu0 %v1005
        %v1037 = vpop.f32.mrf.mxu0
        %v1038 = vadd.f32 0.0, %v1037
        %v1039 = vpop.f32.mrf.mxu0
        %v1040 = vadd.f32 0.0, %v1039
        %1041 = vmatmul.bf16.gmra.mxu0 %v1008
        %v1042 = vpop.f32.mrf.mxu0
        %v1043 = vadd.f32 0.0, %v1042
        %v1044 = vpop.f32.mrf.mxu0
        %v1045 = vadd.f32 0.0, %v1044
        %1046 = vmatmul.bf16.gmra.mxu0 %v1011
        %v1047 = vpop.f32.mrf.mxu0
        %v1048 = vadd.f32 0.0, %v1047
        %v1049 = vpop.f32.mrf.mxu0
        %v1050 = vadd.f32 0.0, %v1049
        %1051 = vmatmul.bf16.gmra.mxu0 %v1014
        %v1052 = vpop.f32.mrf.mxu0
        %v1053 = vadd.f32 0.0, %v1052
        %v1054 = vpop.f32.mrf.mxu0
        %v1055 = vadd.f32 0.0, %v1054
        %1056 = vdwg.mxu0
        %v1057 = vsel %vm777, %v1038, -inf
        %1058 = vmax.xlane.f32.xlu0 %v1057
        %v1059 = vpop.xlane.xlu0 %1058
        %v1060 = vsel %vm777, %v1040, -inf
        %1061 = vmax.xlane.f32.xlu0 %v1060
        %v1062 = vpop.xlane.xlu0 %1061
        %v1063 = vsel %vm777, %v1043, -inf
        %1064 = vmax.xlane.f32.xlu0 %v1063
        %v1065 = vpop.xlane.xlu0 %1064
        %v1066 = vsel %vm777, %v1045, -inf
        %1067 = vmax.xlane.f32.xlu0 %v1066
        %v1068 = vpop.xlane.xlu0 %1067
        %v1069 = vsel %vm777, %v1048, -inf
        %1070 = vmax.xlane.f32.xlu0 %v1069
        %v1071 = vpop.xlane.xlu0 %1070
        %v1072 = vsel %vm777, %v1050, -inf
        %1073 = vmax.xlane.f32.xlu0 %v1072
        %v1074 = vpop.xlane.xlu0 %1073
        %v1075 = vsel %vm777, %v1053, -inf
        %1076 = vmax.xlane.f32.xlu0 %v1075
        %v1077 = vpop.xlane.xlu0 %1076
        %v1078 = vsel %vm777, %v1055, -inf
        %1079 = vmax.xlane.f32.xlu0 %v1078
        %v1080 = vpop.xlane.xlu0 %1079
        %v1081 = vsub.f32 %v1038, %v1059
        %v1082 = vsub.f32 %v1040, %v1062
        %v1083 = vsub.f32 %v1043, %v1065
        %v1084 = vsub.f32 %v1045, %v1068
        %v1085 = vsub.f32 %v1048, %v1071
        %v1086 = vsub.f32 %v1050, %v1074
        %v1087 = vsub.f32 %v1053, %v1077
        %v1088 = vsub.f32 %v1055, %v1080
        %v1089 = vmul.f32 %v1081, 1.442695
        %v1090 = vpow.pop %v1089
        %v1091 = vmul.f32 %v1082, 1.442695
        %v1092 = vpow.pop %v1091
        %v1093 = vmul.f32 %v1083, 1.442695
        %v1094 = vpow.pop %v1093
        %v1095 = vmul.f32 %v1084, 1.442695
        %v1096 = vpow.pop %v1095
        %v1097 = vmul.f32 %v1085, 1.442695
        %v1098 = vpow.pop %v1097
        %v1099 = vmul.f32 %v1086, 1.442695
        %v1100 = vpow.pop %v1099
        %v1101 = vmul.f32 %v1087, 1.442695
        %v1102 = vpow.pop %v1101
        %v1103 = vmul.f32 %v1088, 1.442695
        %v1104 = vpow.pop %v1103
        %v1105 = vsel %vm777, %v1090, 0.0
        %1106 = vadd.xlane.f32.xlu0 %v1105
        %v1107 = vpop.xlane.xlu0 %1106
        %v1108 = vsel %vm777, %v1092, 0.0
        %1109 = vadd.xlane.f32.xlu0 %v1108
        %v1110 = vpop.xlane.xlu0 %1109
        %v1111 = vsel %vm777, %v1094, 0.0
        %1112 = vadd.xlane.f32.xlu0 %v1111
        %v1113 = vpop.xlane.xlu0 %1112
        %v1114 = vsel %vm777, %v1096, 0.0
        %1115 = vadd.xlane.f32.xlu0 %v1114
        %v1116 = vpop.xlane.xlu0 %1115
        %v1117 = vsel %vm777, %v1098, 0.0
        %1118 = vadd.xlane.f32.xlu0 %v1117
        %v1119 = vpop.xlane.xlu0 %1118
        %v1120 = vsel %vm777, %v1100, 0.0
        %1121 = vadd.xlane.f32.xlu0 %v1120
        %v1122 = vpop.xlane.xlu0 %1121
        %v1123 = vsel %vm777, %v1102, 0.0
        %1124 = vadd.xlane.f32.xlu0 %v1123
        %v1125 = vpop.xlane.xlu0 %1124
        %v1126 = vsel %vm777, %v1104, 0.0
        %1127 = vadd.xlane.f32.xlu0 %v1126
        %v1128 = vpop.xlane.xlu0 %1127
        %v1129 = vrcp.pop %v1107
        %v1130 = vrcp.pop %v1110
        %v1131 = vrcp.pop %v1113
        %v1132 = vrcp.pop %v1116
        %v1133 = vrcp.pop %v1119
        %v1134 = vrcp.pop %v1122
        %v1135 = vrcp.pop %v1125
        %v1136 = vrcp.pop %v1128
        %v1137 = vmul.f32 %v1090, %v1129
        %v1138 = vmul.f32 %v1092, %v1130
        %v1139 = vmul.f32 %v1094, %v1131
        %v1140 = vmul.f32 %v1096, %v1132
        %v1141 = vmul.f32 %v1098, %v1133
        %v1142 = vmul.f32 %v1100, %v1134
        %v1143 = vmul.f32 %v1102, %v1135
        %v1144 = vmul.f32 %v1104, %v1136
        %v1145 = vpack.c.bf16 %v1138, %v1137
        %v1146 = vpack.c.bf16 %v1140, %v1139
        %v1147 = vpack.c.bf16 %v1142, %v1141
        %v1148 = vpack.c.bf16 %v1144, %v1143
        %1153 = vrot.lane.b32.xlu0 %v988, 64
        %v1154 = vpop.permute.xlu0 %1153
        %1155 = vrot.lane.b32.xlu0 %v989, 64
        %v1156 = vpop.permute.xlu0 %1155
        %1157 = vrot.lane.b32.xlu0 %v990, 64
        %v1158 = vpop.permute.xlu0 %1157
        %1159 = vrot.lane.b32.xlu0 %v991, 64
        %v1160 = vpop.permute.xlu0 %1159
        %v1166 = vsel %vm777, %v1145, 0
        %v1169 = vsel %vm777, %v1146, 0
        %v1172 = vsel %vm777, %v1147, 0
        %v1175 = vsel %vm777, %v1148, 0
        %1177 = vmatpush.bf16.msra.mxu0 0
        %1178 = vmatpush.bf16.msra.mxu0 0
        %1179 = vmatpush.bf16.msra.mxu0 0
        %1180 = vmatpush.bf16.msra.mxu0 0
        %1181 = vmatpush.bf16.msra.mxu0 %v1160
        %1182 = vmatpush.bf16.msra.mxu0 %v1158
        %1183 = vmatpush.bf16.msra.mxu0 %v1156
        %1184 = vmatpush.bf16.msra.mxu0 %v1154
        %1185 = vmatmul.bf16.gmra.mxu0 %v1166
        %v1186 = vpop.f32.mrf.mxu0
        %v1187 = vadd.f32 0.0, %v1186
        %v1188 = vpop.f32.mrf.mxu0
        %v1189 = vadd.f32 0.0, %v1188
        %1190 = vmatmul.bf16.gmra.mxu0 %v1169
        %v1191 = vpop.f32.mrf.mxu0
        %v1192 = vadd.f32 0.0, %v1191
        %v1193 = vpop.f32.mrf.mxu0
        %v1194 = vadd.f32 0.0, %v1193
        %1195 = vmatmul.bf16.gmra.mxu0 %v1172
        %v1196 = vpop.f32.mrf.mxu0
        %v1197 = vadd.f32 0.0, %v1196
        %v1198 = vpop.f32.mrf.mxu0
        %v1199 = vadd.f32 0.0, %v1198
        %1200 = vmatmul.bf16.gmra.mxu0 %v1175
        %v1201 = vpop.f32.mrf.mxu0
        %v1202 = vadd.f32 0.0, %v1201
        %v1203 = vpop.f32.mrf.mxu0
        %v1204 = vadd.f32 0.0, %v1203
        %1205 = vdwg.mxu0
        %v1206 = vpack.c.bf16 %v1189, %v1187
        %v1207 = vpack.c.bf16 %v1194, %v1192
        %v1208 = vpack.c.bf16 %v1199, %v1197
        %v1209 = vpack.c.bf16 %v1204, %v1202
        %v1210 = vld [vmem:[%s6 + $0x20] sm:$0xf]
        %v1211 = vld [vmem:[%s6 + $0x24] sm:$0xf]
        %v1212 = vld [vmem:[%s6 + $0x28] sm:$0xf]
        %v1213 = vld [vmem:[%s6 + $0x2c] sm:$0xf]
        %v1214 = vld [vmem:[%s6 + $0x30] sm:$0xf]
        %v1215 = vld [vmem:[%s6 + $0x34] sm:$0xf]
        %v1216 = vld [vmem:[%s6 + $0x38] sm:$0xf]
        %v1217 = vld [vmem:[%s6 + $0x3c] sm:$0xf]
        %v1226 = vunpack.c.l.b16 %v1210
        %v1227 = vunpack.c.l.b16 %v1211
        %v1228 = vunpack.c.l.b16 %v1212
        %v1229 = vunpack.c.l.b16 %v1213
        %v1230 = vunpack.c.l.b16 %v1214
        %v1231 = vunpack.c.l.b16 %v1215
        %v1232 = vunpack.c.l.b16 %v1216
        %v1233 = vunpack.c.l.b16 %v1217
        %v1234 = vpack.c.b16 %v1227, %v1226
        %v1235 = vpack.c.b16 %v1229, %v1228
        %v1236 = vpack.c.b16 %v1231, %v1230
        %v1237 = vpack.c.b16 %v1233, %v1232
        %v1243 = vsel %vm777, %v1206, 0
        %v1246 = vsel %vm777, %v1207, 0
        %v1249 = vsel %vm777, %v1208, 0
        %v1252 = vsel %vm777, %v1209, 0
        %1254 = vmatpush.bf16.msra.mxu0 0
        %1255 = vmatpush.bf16.msra.mxu0 0
        %1256 = vmatpush.bf16.msra.mxu0 0
        %1257 = vmatpush.bf16.msra.mxu0 0
        %1258 = vmatpush.bf16.msra.mxu0 %v1237
        %1259 = vmatpush.bf16.msra.mxu0 %v1236
        %1260 = vmatpush.bf16.msra.mxu0 %v1235
        %1261 = vmatpush.bf16.msra.mxu0 %v1234
        %1262 = vmatmul.bf16.gmra.mxu0 %v1243
        %v1263 = vpop.f32.mrf.mxu0
        %v1264 = vadd.f32 0.0, %v1263
        %v1265 = vpop.f32.mrf.mxu0
        %v1266 = vadd.f32 0.0, %v1265
        %1267 = vmatmul.bf16.gmra.mxu0 %v1246
        %v1268 = vpop.f32.mrf.mxu0
        %v1269 = vadd.f32 0.0, %v1268
        %v1270 = vpop.f32.mrf.mxu0
        %v1271 = vadd.f32 0.0, %v1270
        %1272 = vmatmul.bf16.gmra.mxu0 %v1249
        %v1273 = vpop.f32.mrf.mxu0
        %v1274 = vadd.f32 0.0, %v1273
        %v1275 = vpop.f32.mrf.mxu0
        %v1276 = vadd.f32 0.0, %v1275
        %1277 = vmatmul.bf16.gmra.mxu0 %v1252
        %v1278 = vpop.f32.mrf.mxu0
        %v1279 = vadd.f32 0.0, %v1278
        %v1280 = vpop.f32.mrf.mxu0
        %v1281 = vadd.f32 0.0, %v1280
        %1282 = vdwg.mxu0
        %v1291 = vunpack.c.l.b16 %v968
        %v1292 = vunpack.c.l.b16 %v969
        %v1293 = vunpack.c.l.b16 %v970
        %v1294 = vunpack.c.l.b16 %v971
        %v1295 = vunpack.c.l.b16 %v972
        %v1296 = vunpack.c.l.b16 %v973
        %v1297 = vunpack.c.l.b16 %v974
        %v1298 = vunpack.c.l.b16 %v975
        %v1299 = vpack.c.b16 %v1292, %v1291
        %v1300 = vpack.c.b16 %v1294, %v1293
        %v1301 = vpack.c.b16 %v1296, %v1295
        %v1302 = vpack.c.b16 %v1298, %v1297
        %v1308 = vsel %vm777, %v964, 0
        %v1311 = vsel %vm777, %v965, 0
        %v1314 = vsel %vm777, %v966, 0
        %v1317 = vsel %vm777, %v967, 0
        %1319 = vmatpush.bf16.msra.mxu0 0
        %1320 = vmatpush.bf16.msra.mxu0 0
        %1321 = vmatpush.bf16.msra.mxu0 0
        %1322 = vmatpush.bf16.msra.mxu0 0
        %1323 = vmatpush.bf16.msra.mxu0 %v1302
        %1324 = vmatpush.bf16.msra.mxu0 %v1301
        %1325 = vmatpush.bf16.msra.mxu0 %v1300
        %1326 = vmatpush.bf16.msra.mxu0 %v1299
        %1327 = vmatmul.bf16.gmra.mxu0 %v1308
        %v1328 = vpop.f32.mrf.mxu0
        %v1329 = vadd.f32 %v1264, %v1328
        %v1330 = vpop.f32.mrf.mxu0
        %v1331 = vadd.f32 %v1266, %v1330
        %1332 = vmatmul.bf16.gmra.mxu0 %v1311
        %v1333 = vpop.f32.mrf.mxu0
        %v1334 = vadd.f32 %v1269, %v1333
        %v1335 = vpop.f32.mrf.mxu0
        %v1336 = vadd.f32 %v1271, %v1335
        %1337 = vmatmul.bf16.gmra.mxu0 %v1314
        %v1338 = vpop.f32.mrf.mxu0
        %v1339 = vadd.f32 %v1274, %v1338
        %v1340 = vpop.f32.mrf.mxu0
        %v1341 = vadd.f32 %v1276, %v1340
        %1342 = vmatmul.bf16.gmra.mxu0 %v1317
        %v1343 = vpop.f32.mrf.mxu0
        %v1344 = vadd.f32 %v1279, %v1343
        %v1345 = vpop.f32.mrf.mxu0
        %v1346 = vadd.f32 %v1281, %v1345
        %1347 = vdwg.mxu0
        %v1348 = vld [vmem:[%s7] sm:$0x1]
        %v1350 = vperm.slane %v1348, 0
        %v1352 = vadd.f32 %v1329, %v1350
        %v1353 = vadd.f32 %v1331, %v1350
        %v1354 = vadd.f32 %v1334, %v1350
        %v1355 = vadd.f32 %v1336, %v1350
        %v1356 = vadd.f32 %v1339, %v1350
        %v1357 = vadd.f32 %v1341, %v1350
        %v1358 = vadd.f32 %v1344, %v1350
        %v1359 = vadd.f32 %v1346, %v1350
        %v1360 = vadd.f32 %v1352, %v305
        %v1361 = vadd.f32 %v1353, %v306
        %v1362 = vadd.f32 %v1354, %v307
        %v1363 = vadd.f32 %v1355, %v308
        %v1364 = vadd.f32 %v1356, %v309
        %v1365 = vadd.f32 %v1357, %v310
        %v1366 = vadd.f32 %v1358, %v311
        %v1367 = vadd.f32 %v1359, %v312
        %1368 = vst [vmem:[%s298] sm:$0xff] %v1360
        %1369 = vst [vmem:[%s298 + $0x8] sm:$0xff] %v1361
        %1370 = vst [vmem:[%s298 + $0x10] sm:$0xff] %v1362
        %1371 = vst [vmem:[%s298 + $0x18] sm:$0xff] %v1363
        %1372 = vst [vmem:[%s298 + $0x20] sm:$0xff] %v1364
        %1373 = vst [vmem:[%s298 + $0x28] sm:$0xff] %v1365
        %1374 = vst [vmem:[%s298 + $0x30] sm:$0xff] %v1366
        %1375 = vst [vmem:[%s298 + $0x38] sm:$0xff] %v1367
        %s1376 = sand.u32 %s203, 1
        %s1377 = scalar_lea.sflag [#allocation3], %s1376
        %s1378 = sand.u32 %s203, 1
        %s1379 = smul.addr %s1378, 64
        %s1380 = scalar_lea.vmem [#allocation2], %s1379
        // Predicated region
        $region53: #{self_attention_forward.1} parent=51 // pred_check
          %p1381 = pneg %p213
        $region54: #{self_attention_forward.1} parent=51 // pred_check_branch
          %1383 = sbr.rel (%p1381) target = $region56
        $region55: #{self_attention_forward.1} parent=51 // pred_region
          %1385 = vsyncadd %s1377, 0
          %s1386 = smul.addr %s22, 8
          %s1387 = smul.addr %s1386, 8
          %s1388 = scalar_lea.hbm %s8, %s1387
          %s1389 = sshll.u32 %s1380, 4
          %s1390 = int_to_ptr.vmem [resolvable:$true] %s1389
          %s1391 = sshll.u32 %s1388, 4
          %s1392 = int_to_ptr.hbm [resolvable:$true] %s1391
          %1397 = dma.vmem_to_hbm [thread:$0]  %s1390, 1024, %s1392, %s1377, 128, 128, 8
        $region56: #{self_attention_forward.1} parent=51 // pred_fallthru
          _
      $region52: #{self_attention_forward.1} parent=5 // pred_fallthru
        _
      %p1398 = scmp.le.s32.totalorder 2, %s17
      // Predicated region
      $region57: #{self_attention_forward.1} parent=5 // pred_check
        %p1399 = pneg %p1398
      $region58: #{self_attention_forward.1} parent=5 // pred_check_branch
        %1401 = sbr.rel (%p1399) target = $region60
      $region59: #{self_attention_forward.1} parent=5 // pred_region
        %s1402 = ssub.s32 %s17, 2
        // Predicated region
        $region61: #{self_attention_forward.1} parent=59 // pred_check
          %p1403 = pneg %p219
        $region62: #{self_attention_forward.1} parent=59 // pred_check_branch
          %1405 = sbr.rel (%p1403) target = $region64
        $region63: #{self_attention_forward.1} parent=59 // pred_region
          %s1406 = sand.u32 %s204, 1
          %s1407 = scalar_lea.sflag [#allocation3], %s1406
          %s1408 = sand.u32 %s204, 1
          %s1409 = smul.addr %s1408, 64
          %s1410 = scalar_lea.vmem [#allocation2], %s1409
          %1412 = dma.done %s1407, 1024
        $region64: #{self_attention_forward.1} parent=59 // pred_fallthru
          _
      $region60: #{self_attention_forward.1} parent=5 // pred_fallthru
        _
    $region6: #{self_attention_forward.1} parent=1 // loop_footer
      %s21 = sadd.s32 1, %s17
    $region7: #{self_attention_forward.1} parent=1 // loop_footer_branch
      %16 = sbr.rel target = $region3
    $region8: #{self_attention_forward.1} parent=1 // loop_exit
      _
    %1413 = vsyncpa [#allocation3], 1
    %s1414 = scalar_lea.sflag [#allocation3], 1
    %1415 = vsyncpa %s1414, 1

</llo_original>
